<compile_context>
chip_gen: v6e
topology: v6e:2x2x1
jax: 0.10.0
libtpu: 0.0.40
codegen_flags: <defaults>
</compile_context>

<pallas_src>
import functools

import jax
import jax.numpy as jnp
from jax import lax
from jax.experimental import pallas as pl
from jax.experimental.pallas import tpu as pltpu


def _round_up(x, m):
    return (x + m - 1) // m * m


def _rnn_kernel(emb_ref, w_ih_ref, w_hh_ref, b_ref, h_out_ref, seq_ref,
                *, seq_len, needs_mask, unroll):
    """One (batch-chunk, time-block) grid step of the multi-layer tanh RNN.

    emb_ref  : (Tt, Bc, Hp) time-major embedded input block (streamed over time)
    w_ih_ref : (L, Hp, Hp)  input->hidden weights, pre-transposed (x @ W), resident
    w_hh_ref : (L, Hp, Hp)  hidden->hidden weights, pre-transposed, resident
    b_ref    : (L, 1, Hp)   pre-summed bias (b_ih + b_hh), f32, resident
    h_out_ref: (L, Bc, Hp)  resident output block; also the running hidden state
    seq_ref  : (Tt, Bc, Hp) f32 scratch: hoisted projections / next layer's inputs
    """
    num_layers, bc, hp = h_out_ref.shape
    block_t = emb_ref.shape[0]
    t_blk = pl.program_id(1)                 # axis 0 = batch chunks, axis 1 = time
    block_start = t_blk * block_t
    compute_dtype = w_ih_ref.dtype

    # h_0 = 0 (PyTorch default when no initial hidden is passed); re-runs at the
    # start of every batch chunk (the resident output block changes with axis 0).
    @pl.when(t_blk == 0)
    def _():
        h_out_ref[...] = jnp.zeros_like(h_out_ref)

    for l in range(num_layers):              # few layers -> static unroll
        # ---- hoisted input projection: ONE (Tt*Bc, Hp) MXU matmul per block ----
        if l == 0:
            x_blk = emb_ref[...]                               # already compute dtype
        else:
            x_blk = seq_ref[...].astype(compute_dtype)         # prev layer outputs
        proj = jnp.dot(x_blk.reshape(block_t * bc, hp), w_ih_ref[l],
                       preferred_element_type=jnp.float32) + b_ref[l]
        seq_ref[...] = proj.reshape(block_t, bc, hp)

        w_hh = w_hh_ref[l]                                     # hold across the block

        # ---- sequential recurrence: only h @ W_hh + tanh on the critical path ----
        def step(t, h):
            pre = seq_ref[t] + jnp.dot(h.astype(compute_dtype), w_hh,
                                       preferred_element_type=jnp.float32)
            h_new = jnp.tanh(pre)
            if needs_mask:
                # Padded timesteps must NOT update h (tanh(h@W_hh + b) != h).
                h_new = jnp.where(block_start + t < seq_len, h_new, h)
            if l < num_layers - 1:
                seq_ref[t] = h_new                             # next layer's input
            return h_new

        h = h_out_ref[l]                                       # state from prev block
        if block_t <= unroll:
            for t in range(block_t):                           # tiny block: full unroll
                h = step(t, h)
        else:
            h = lax.fori_loop(0, block_t, step, h, unroll=unroll)
        h_out_ref[l] = h                                       # persists across time blocks


def prepare_params(emb_table, w_ih, w_hh, b_ih, b_hh, param_dtype=jnp.bfloat16):
    """One-time parameter prep (transpose / pad / pre-sum / cast) — load time."""
    num_layers, hidden, _ = w_ih.shape
    # 128-lane alignment; H >= 256 users get 256-MXU-friendly K/N for free when
    # H is already a multiple of 256 (padding further to 256 trades extra FLOPs).
    hp = _round_up(hidden, 128)
    pad_h = hp - hidden
    w_ih_p = jnp.pad(jnp.transpose(w_ih, (0, 2, 1)),
                     ((0, 0), (0, pad_h), (0, pad_h))).astype(param_dtype)
    w_hh_p = jnp.pad(jnp.transpose(w_hh, (0, 2, 1)),
                     ((0, 0), (0, pad_h), (0, pad_h))).astype(param_dtype)
    b_p = jnp.pad((b_ih + b_hh).reshape(num_layers, 1, hidden),
                  ((0, 0), (0, 0), (0, pad_h))).astype(jnp.float32)
    emb_p = jnp.pad(emb_table, ((0, 0), (0, pad_h))).astype(param_dtype)
    return emb_p, w_ih_p, w_hh_p, b_p


def encoder_rnn_forward(token_ids, emb_p, w_ih_p, w_hh_p, b_p, hidden_size,
                        time_block=32, batch_block=None,
                        vmem_cap_bytes=48 * 1024 * 1024):
    """EncoderRNN.forward. Returns final hidden state (num_layers, B, H)."""
    batch, seq_len = token_ids.shape
    num_layers, hp, _ = w_ih_p.shape

    bp = _round_up(batch, 8)
    if batch_block is None:
        bc = bp
    else:
        bc = max(8, _round_up(min(batch_block, bp), 8))
        while bp % bc:                       # keep the chunk an exact divisor of Bp
            bc += 8
    nb = bp // bc

    bt = max(1, min(time_block, seq_len))
    t_pad = _round_up(seq_len, bt)
    nt = t_pad // bt

    # --- glue: time-major embedding gather (+ eval-mode dropout = identity) -----
    ids = token_ids.T                                        # (T, B): tiny int32 transpose
    ids = jnp.pad(ids, ((0, t_pad - seq_len), (0, bp - batch)))
    emb_tm = jnp.take(emb_p, ids, axis=0)                    # (T_pad, Bp, Hp), narrow dtype

    # --- VMEM budget: resident weights + double-buffered streamed block + state --
    wbytes = w_ih_p.dtype.itemsize
    ebytes = emb_p.dtype.itemsize
    est = (2 * 2 * num_layers * hp * hp * wbytes             # resident weights (2 bufs)
           + 2 * num_layers * hp * 4                         # bias
           + 2 * bt * bc * hp * ebytes                       # double-buffered emb blocks
           + 2 * num_layers * bc * hp * 4                    # resident output/hidden
           + bt * bc * hp * 4)                               # seq_ref scratch
    vmem_limit = int(min(max(est * 3 // 2, 32 * 1024 * 1024), vmem_cap_bytes))

    kernel = functools.partial(_rnn_kernel, seq_len=seq_len,
                               needs_mask=(t_pad != seq_len), unroll=8)

    hidden_p = pl.pallas_call(
        kernel,
        out_shape=jax.ShapeDtypeStruct((num_layers, bp, hp), jnp.float32),
        grid_spec=pltpu.PrefetchScalarGridSpec(
            num_scalar_prefetch=0,
            grid=(nb, nt),                                   # (batch chunks, time blocks)
            in_specs=[
                pl.BlockSpec((bt, bc, hp), lambda b, t: (t, b, 0)),           # streamed
                pl.BlockSpec((num_layers, hp, hp), lambda b, t: (0, 0, 0)),   # resident
                pl.BlockSpec((num_layers, hp, hp), lambda b, t: (0, 0, 0)),   # resident
                pl.BlockSpec((num_layers, 1, hp), lambda b, t: (0, 0, 0)),    # resident
            ],
            out_specs=pl.BlockSpec((num_layers, bc, hp), lambda b, t: (0, b, 0)),
            scratch_shapes=[pltpu.VMEM((bt, bc, hp), jnp.float32)],
        ),
        compiler_params=pltpu.CompilerParams(
            dimension_semantics=("parallel", "arbitrary"),   # batch || TCs, time sequential
            vmem_limit_bytes=vmem_limit,
        ),
    )(emb_tm, w_ih_p, w_hh_p, b_p)

    return hidden_p[:, :batch, :hidden_size]


def _reference_forward(token_ids, emb_table, w_ih, w_hh, b_ih, b_hh,
                       round_dtype=None):
    """Pure-JAX reference matching torch.nn.RNN(batch_first=True) semantics.

    round_dtype=jnp.bfloat16 mimics the mixed-precision kernel (operands rounded
    to bf16 at every matmul input, f32 accumulation/state/tanh).
    """
    def rnd(x):
        if round_dtype is None:
            return x
        return x.astype(round_dtype).astype(jnp.float32)

    B, T = token_ids.shape
    L, H, _ = w_ih.shape
    w_ih = rnd(w_ih)
    w_hh = rnd(w_hh)
    x_seq = rnd(emb_table)[token_ids]                        # (B, T, H)
    h = jnp.zeros((L, B, H), jnp.float32)
    for t in range(T):
        x = x_seq[:, t, :]
        new_h = []
        for l in range(L):
            pre = rnd(x) @ w_ih[l].T + b_ih[l] + rnd(h[l]) @ w_hh[l].T + b_hh[l]
            hl = jnp.tanh(pre)
            new_h.append(hl)
            x = hl
        h = jnp.stack(new_h, axis=0)
    return h


if __name__ == "__main__":
    key = jax.random.PRNGKey(0)
    k1, k2 = jax.random.split(key)

    fwd = jax.jit(encoder_rnn_forward,
                  static_argnames=("hidden_size", "time_block", "batch_block",
                                   "vmem_cap_bytes"))

    def build(k, vocab, hidden, layers, batch, seq):
        k_emb, k_ids, k_wih, k_whh, k_bih, k_bhh = jax.random.split(k, 6)
        emb = jax.random.normal(k_emb, (vocab, hidden), jnp.float32)
        ids = jax.random.randint(k_ids, (batch, seq), 0, vocab, jnp.int32)
        bound = 1.0 / jnp.sqrt(hidden)
        w_ih = jax.random.uniform(k_wih, (layers, hidden, hidden), jnp.float32, -bound, bound)
        w_hh = jax.random.uniform(k_whh, (layers, hidden, hidden), jnp.float32, -bound, bound)
        b_ih = jax.random.uniform(k_bih, (layers, hidden), jnp.float32, -bound, bound)
        b_hh = jax.random.uniform(k_bhh, (layers, hidden), jnp.float32, -bound, bound)
        return emb, ids, w_ih, w_hh, b_ih, b_hh

    # ---- case 1: vocab=50, H=32, L=2, B=2, T=8; time_block=4 exercises the
    #      streamed time grid + cross-block state carry (unrolled recurrence).
    emb, ids, w_ih, w_hh, b_ih, b_hh = build(k1, 50, 32, 2, 2, 8)
    ref = _reference_forward(ids, emb, w_ih, w_hh, b_ih, b_hh)

    p32 = prepare_params(emb, w_ih, w_hh, b_ih, b_hh, param_dtype=jnp.float32)
    out = jax.block_until_ready(fwd(ids, *p32, hidden_size=32, time_block=4))
    assert out.shape == (2, 2, 32)
    err = float(jnp.max(jnp.abs(out - ref)))
    assert err < 1e-4, f"case1 f32 err={err}"

    p16 = prepare_params(emb, w_ih, w_hh, b_ih, b_hh, param_dtype=jnp.bfloat16)
    ref16 = _reference_forward(ids, emb, w_ih, w_hh, b_ih, b_hh,
                               round_dtype=jnp.bfloat16)
    out16 = jax.block_until_ready(fwd(ids, *p16, hidden_size=32, time_block=4))
    err16 = float(jnp.max(jnp.abs(out16 - ref16)))
    assert err16 < 5e-3, f"case1 bf16 err={err16}"

    # ---- case 2: H=64, L=2, B=13 (padded to 16, split into two 'parallel'
    #      chunks of 8), T=21 (padded to 32 -> masked timesteps), time_block=16
    #      exercises the partially-unrolled fori_loop recurrence path.
    emb, ids, w_ih, w_hh, b_ih, b_hh = build(k2, 64, 64, 2, 13, 21)
    ref = _reference_forward(ids, emb, w_ih, w_hh, b_ih, b_hh)

    p32 = prepare_params(emb, w_ih, w_hh, b_ih, b_hh, param_dtype=jnp.float32)
    out = jax.block_until_ready(fwd(ids, *p32, hidden_size=64,
                                    time_block=16, batch_block=8))
    assert out.shape == (2, 13, 64)
    err = float(jnp.max(jnp.abs(out - ref)))
    assert err < 1e-3, f"case2 f32 err={err}"

    p16 = prepare_params(emb, w_ih, w_hh, b_ih, b_hh, param_dtype=jnp.bfloat16)
    ref16 = _reference_forward(ids, emb, w_ih, w_hh, b_ih, b_hh,
                               round_dtype=jnp.bfloat16)
    out16 = jax.block_until_ready(fwd(ids, *p16, hidden_size=64,
                                      time_block=16, batch_block=8))
    err16 = float(jnp.max(jnp.abs(out16 - ref16)))
    assert err16 < 5e-3, f"case2 bf16 err={err16}"

    print("KERNEL_OK")
</pallas_src>

<mosaic_0001>
module attributes {stable_mosaic.version = 11 : i64} {
  func.func @_rnn_kernel(%arg0: i32, %arg1: i32, %arg2: memref<4x8x128xf32, #tpu.memory_space<vmem>>, %arg3: memref<2x128x128xf32, #tpu.memory_space<vmem>>, %arg4: memref<2x128x128xf32, #tpu.memory_space<vmem>>, %arg5: memref<2x1x128xf32, #tpu.memory_space<vmem>>, %arg6: memref<2x8x128xf32, #tpu.memory_space<vmem>>, %arg7: memref<4x8x128xf32, #tpu.memory_space<vmem>>) attributes {dimension_semantics = [#tpu.dimension_semantics<parallel>, #tpu.dimension_semantics<arbitrary>], iteration_bounds = array<i64: 1, 2>, scalar_prefetch = 0 : i64, scratch_operands = 1 : i64, tpu.core_type = #tpu.core_type<tc>, window_params = [{transform_indices = @transform_0, window_bounds = array<i64: 4, 8, 128>}, {pipeline_mode = #tpu.pipeline_mode<synchronous>, transform_indices = @transform_1, window_bounds = array<i64: 2, 128, 128>}, {pipeline_mode = #tpu.pipeline_mode<synchronous>, transform_indices = @transform_2, window_bounds = array<i64: 2, 128, 128>}, {pipeline_mode = #tpu.pipeline_mode<synchronous>, transform_indices = @transform_3, window_bounds = array<i64: 2, 1, 128>}, {transform_indices = @transform_4, window_bounds = array<i64: 2, 8, 128>}]} {
    %c0_i32 = arith.constant 0 : i32
    %0 = arith.cmpi eq, %arg1, %c0_i32 : i32
    %1 = arith.extui %0 : i1 to i32
    %c0_i32_0 = arith.constant 0 : i32
    %2 = arith.cmpi ne, %1, %c0_i32_0 : i32
    scf.if %2 {
      %cst_84 = arith.constant 0.000000e+00 : f32
      %91 = vector.broadcast %cst_84 : f32 to vector<2x8x128xf32>
      %c0_85 = arith.constant 0 : index
      %c0_86 = arith.constant 0 : index
      %c0_87 = arith.constant 0 : index
      %92 = vector.load %arg6[%c0_85, %c0_86, %c0_87] : memref<2x8x128xf32, #tpu.memory_space<vmem>>, vector<2x8x128xf32>
      tpu.vector_store %arg6[%c0_85, %c0_86, %c0_87], %91 {strides = array<i32>} : memref<2x8x128xf32, #tpu.memory_space<vmem>>, vector<2x8x128xf32>,
    } else {
    }
    %c0 = arith.constant 0 : index
    %c0_1 = arith.constant 0 : index
    %c0_2 = arith.constant 0 : index
    %3 = vector.load %arg2[%c0, %c0_1, %c0_2] : memref<4x8x128xf32, #tpu.memory_space<vmem>>, vector<4x8x128xf32>
    %4 = vector.shape_cast %3 : vector<4x8x128xf32> to vector<32x128xf32>
    %c0_3 = arith.constant 0 : index
    %c0_4 = arith.constant 0 : index
    %c0_5 = arith.constant 0 : index
    %5 = vector.load %arg3[%c0_3, %c0_4, %c0_5] : memref<2x128x128xf32, #tpu.memory_space<vmem>>, vector<1x128x128xf32>
    %6 = vector.shape_cast %5 : vector<1x128x128xf32> to vector<128x128xf32>
    %cst = arith.constant dense<0.000000e+00> : vector<32x128xf32>
    %7 = tpu.matmul %4, %6, %cst {dimension_numbers = #tpu.dot_dimension_numbers<[1], [0], [0], [1], [0, 0, 1, 1], [], []>} : vector<32x128xf32>, vector<128x128xf32>, vector<32x128xf32> -> vector<32x128xf32>
    %c0_6 = arith.constant 0 : index
    %c0_7 = arith.constant 0 : index
    %c0_8 = arith.constant 0 : index
    %8 = vector.load %arg5[%c0_6, %c0_7, %c0_8] : memref<2x1x128xf32, #tpu.memory_space<vmem>>, vector<1x1x128xf32>
    %9 = vector.shape_cast %8 : vector<1x1x128xf32> to vector<1x128xf32>
    %10 = vector.broadcast %9 : vector<1x128xf32> to vector<32x128xf32>
    %11 = arith.addf %7, %10 : vector<32x128xf32>
    %12 = vector.shape_cast %11 : vector<32x128xf32> to vector<4x8x128xf32>
    %c0_9 = arith.constant 0 : index
    %c0_10 = arith.constant 0 : index
    %c0_11 = arith.constant 0 : index
    %13 = vector.load %arg7[%c0_9, %c0_10, %c0_11] : memref<4x8x128xf32, #tpu.memory_space<vmem>>, vector<4x8x128xf32>
    tpu.vector_store %arg7[%c0_9, %c0_10, %c0_11], %12 {strides = array<i32>} : memref<4x8x128xf32, #tpu.memory_space<vmem>>, vector<4x8x128xf32>,
    %c0_12 = arith.constant 0 : index
    %c0_13 = arith.constant 0 : index
    %c0_14 = arith.constant 0 : index
    %14 = vector.load %arg4[%c0_12, %c0_13, %c0_14] : memref<2x128x128xf32, #tpu.memory_space<vmem>>, vector<1x128x128xf32>
    %15 = vector.shape_cast %14 : vector<1x128x128xf32> to vector<128x128xf32>
    %c0_15 = arith.constant 0 : index
    %c0_16 = arith.constant 0 : index
    %c0_17 = arith.constant 0 : index
    %16 = vector.load %arg6[%c0_15, %c0_16, %c0_17] : memref<2x8x128xf32, #tpu.memory_space<vmem>>, vector<1x8x128xf32>
    %17 = vector.shape_cast %16 : vector<1x8x128xf32> to vector<8x128xf32>
    %c0_18 = arith.constant 0 : index
    %c0_19 = arith.constant 0 : index
    %c0_20 = arith.constant 0 : index
    %18 = vector.load %arg7[%c0_18, %c0_19, %c0_20] : memref<4x8x128xf32, #tpu.memory_space<vmem>>, vector<1x8x128xf32>
    %19 = vector.shape_cast %18 : vector<1x8x128xf32> to vector<8x128xf32>
    %cst_21 = arith.constant dense<0.000000e+00> : vector<8x128xf32>
    %20 = tpu.matmul %17, %15, %cst_21 {dimension_numbers = #tpu.dot_dimension_numbers<[1], [0], [0], [1], [0, 0, 1, 1], [], []>} : vector<8x128xf32>, vector<128x128xf32>, vector<8x128xf32> -> vector<8x128xf32>
    %21 = arith.addf %19, %20 : vector<8x128xf32>
    %22 = math.tanh %21 : vector<8x128xf32>
    %c0_22 = arith.constant 0 : index
    %c0_23 = arith.constant 0 : index
    %c0_24 = arith.constant 0 : index
    %23 = vector.load %arg7[%c0_22, %c0_23, %c0_24] : memref<4x8x128xf32, #tpu.memory_space<vmem>>, vector<1x8x128xf32>
    %24 = vector.shape_cast %23 : vector<1x8x128xf32> to vector<8x128xf32>
    %25 = vector.shape_cast %22 : vector<8x128xf32> to vector<1x8x128xf32>
    tpu.vector_store %arg7[%c0_22, %c0_23, %c0_24], %25 {strides = array<i32>} : memref<4x8x128xf32, #tpu.memory_space<vmem>>, vector<1x8x128xf32>,
    %c1 = arith.constant 1 : index
    %c0_25 = arith.constant 0 : index
    %c0_26 = arith.constant 0 : index
    %26 = vector.load %arg7[%c1, %c0_25, %c0_26] : memref<4x8x128xf32, #tpu.memory_space<vmem>>, vector<1x8x128xf32>
    %27 = vector.shape_cast %26 : vector<1x8x128xf32> to vector<8x128xf32>
    %cst_27 = arith.constant dense<0.000000e+00> : vector<8x128xf32>
    %28 = tpu.matmul %22, %15, %cst_27 {dimension_numbers = #tpu.dot_dimension_numbers<[1], [0], [0], [1], [0, 0, 1, 1], [], []>} : vector<8x128xf32>, vector<128x128xf32>, vector<8x128xf32> -> vector<8x128xf32>
    %29 = arith.addf %27, %28 : vector<8x128xf32>
    %30 = math.tanh %29 : vector<8x128xf32>
    %c1_28 = arith.constant 1 : index
    %c0_29 = arith.constant 0 : index
    %c0_30 = arith.constant 0 : index
    %31 = vector.load %arg7[%c1_28, %c0_29, %c0_30] : memref<4x8x128xf32, #tpu.memory_space<vmem>>, vector<1x8x128xf32>
    %32 = vector.shape_cast %31 : vector<1x8x128xf32> to vector<8x128xf32>
    %33 = vector.shape_cast %30 : vector<8x128xf32> to vector<1x8x128xf32>
    tpu.vector_store %arg7[%c1_28, %c0_29, %c0_30], %33 {strides = array<i32>} : memref<4x8x128xf32, #tpu.memory_space<vmem>>, vector<1x8x128xf32>,
    %c2 = arith.constant 2 : index
    %c0_31 = arith.constant 0 : index
    %c0_32 = arith.constant 0 : index
    %34 = vector.load %arg7[%c2, %c0_31, %c0_32] : memref<4x8x128xf32, #tpu.memory_space<vmem>>, vector<1x8x128xf32>
    %35 = vector.shape_cast %34 : vector<1x8x128xf32> to vector<8x128xf32>
    %cst_33 = arith.constant dense<0.000000e+00> : vector<8x128xf32>
    %36 = tpu.matmul %30, %15, %cst_33 {dimension_numbers = #tpu.dot_dimension_numbers<[1], [0], [0], [1], [0, 0, 1, 1], [], []>} : vector<8x128xf32>, vector<128x128xf32>, vector<8x128xf32> -> vector<8x128xf32>
    %37 = arith.addf %35, %36 : vector<8x128xf32>
    %38 = math.tanh %37 : vector<8x128xf32>
    %c2_34 = arith.constant 2 : index
    %c0_35 = arith.constant 0 : index
    %c0_36 = arith.constant 0 : index
    %39 = vector.load %arg7[%c2_34, %c0_35, %c0_36] : memref<4x8x128xf32, #tpu.memory_space<vmem>>, vector<1x8x128xf32>
    %40 = vector.shape_cast %39 : vector<1x8x128xf32> to vector<8x128xf32>
    %41 = vector.shape_cast %38 : vector<8x128xf32> to vector<1x8x128xf32>
    tpu.vector_store %arg7[%c2_34, %c0_35, %c0_36], %41 {strides = array<i32>} : memref<4x8x128xf32, #tpu.memory_space<vmem>>, vector<1x8x128xf32>,
    %c3 = arith.constant 3 : index
    %c0_37 = arith.constant 0 : index
    %c0_38 = arith.constant 0 : index
    %42 = vector.load %arg7[%c3, %c0_37, %c0_38] : memref<4x8x128xf32, #tpu.memory_space<vmem>>, vector<1x8x128xf32>
    %43 = vector.shape_cast %42 : vector<1x8x128xf32> to vector<8x128xf32>
    %cst_39 = arith.constant dense<0.000000e+00> : vector<8x128xf32>
    %44 = tpu.matmul %38, %15, %cst_39 {dimension_numbers = #tpu.dot_dimension_numbers<[1], [0], [0], [1], [0, 0, 1, 1], [], []>} : vector<8x128xf32>, vector<128x128xf32>, vector<8x128xf32> -> vector<8x128xf32>
    %45 = arith.addf %43, %44 : vector<8x128xf32>
    %46 = math.tanh %45 : vector<8x128xf32>
    %c3_40 = arith.constant 3 : index
    %c0_41 = arith.constant 0 : index
    %c0_42 = arith.constant 0 : index
    %47 = vector.load %arg7[%c3_40, %c0_41, %c0_42] : memref<4x8x128xf32, #tpu.memory_space<vmem>>, vector<1x8x128xf32>
    %48 = vector.shape_cast %47 : vector<1x8x128xf32> to vector<8x128xf32>
    %49 = vector.shape_cast %46 : vector<8x128xf32> to vector<1x8x128xf32>
    tpu.vector_store %arg7[%c3_40, %c0_41, %c0_42], %49 {strides = array<i32>} : memref<4x8x128xf32, #tpu.memory_space<vmem>>, vector<1x8x128xf32>,
    %c0_43 = arith.constant 0 : index
    %c0_44 = arith.constant 0 : index
    %c0_45 = arith.constant 0 : index
    %50 = vector.load %arg6[%c0_43, %c0_44, %c0_45] : memref<2x8x128xf32, #tpu.memory_space<vmem>>, vector<1x8x128xf32>
    %51 = vector.shape_cast %50 : vector<1x8x128xf32> to vector<8x128xf32>
    %52 = vector.shape_cast %46 : vector<8x128xf32> to vector<1x8x128xf32>
    tpu.vector_store %arg6[%c0_43, %c0_44, %c0_45], %52 {strides = array<i32>} : memref<2x8x128xf32, #tpu.memory_space<vmem>>, vector<1x8x128xf32>,
    %c0_46 = arith.constant 0 : index
    %c0_47 = arith.constant 0 : index
    %c0_48 = arith.constant 0 : index
    %53 = vector.load %arg7[%c0_46, %c0_47, %c0_48] : memref<4x8x128xf32, #tpu.memory_space<vmem>>, vector<4x8x128xf32>
    %54 = vector.shape_cast %53 : vector<4x8x128xf32> to vector<32x128xf32>
    %c1_49 = arith.constant 1 : index
    %c0_50 = arith.constant 0 : index
    %c0_51 = arith.constant 0 : index
    %55 = vector.load %arg3[%c1_49, %c0_50, %c0_51] : memref<2x128x128xf32, #tpu.memory_space<vmem>>, vector<1x128x128xf32>
    %56 = vector.shape_cast %55 : vector<1x128x128xf32> to vector<128x128xf32>
    %cst_52 = arith.constant dense<0.000000e+00> : vector<32x128xf32>
    %57 = tpu.matmul %54, %56, %cst_52 {dimension_numbers = #tpu.dot_dimension_numbers<[1], [0], [0], [1], [0, 0, 1, 1], [], []>} : vector<32x128xf32>, vector<128x128xf32>, vector<32x128xf32> -> vector<32x128xf32>
    %c1_53 = arith.constant 1 : index
    %c0_54 = arith.constant 0 : index
    %c0_55 = arith.constant 0 : index
    %58 = vector.load %arg5[%c1_53, %c0_54, %c0_55] : memref<2x1x128xf32, #tpu.memory_space<vmem>>, vector<1x1x128xf32>
    %59 = vector.shape_cast %58 : vector<1x1x128xf32> to vector<1x128xf32>
    %60 = vector.broadcast %59 : vector<1x128xf32> to vector<32x128xf32>
    %61 = arith.addf %57, %60 : vector<32x128xf32>
    %62 = vector.shape_cast %61 : vector<32x128xf32> to vector<4x8x128xf32>
    %c0_56 = arith.constant 0 : index
    %c0_57 = arith.constant 0 : index
    %c0_58 = arith.constant 0 : index
    %63 = vector.load %arg7[%c0_56, %c0_57, %c0_58] : memref<4x8x128xf32, #tpu.memory_space<vmem>>, vector<4x8x128xf32>
    tpu.vector_store %arg7[%c0_56, %c0_57, %c0_58], %62 {strides = array<i32>} : memref<4x8x128xf32, #tpu.memory_space<vmem>>, vector<4x8x128xf32>,
    %c1_59 = arith.constant 1 : index
    %c0_60 = arith.constant 0 : index
    %c0_61 = arith.constant 0 : index
    %64 = vector.load %arg4[%c1_59, %c0_60, %c0_61] : memref<2x128x128xf32, #tpu.memory_space<vmem>>, vector<1x128x128xf32>
    %65 = vector.shape_cast %64 : vector<1x128x128xf32> to vector<128x128xf32>
    %c1_62 = arith.constant 1 : index
    %c0_63 = arith.constant 0 : index
    %c0_64 = arith.constant 0 : index
    %66 = vector.load %arg6[%c1_62, %c0_63, %c0_64] : memref<2x8x128xf32, #tpu.memory_space<vmem>>, vector<1x8x128xf32>
    %67 = vector.shape_cast %66 : vector<1x8x128xf32> to vector<8x128xf32>
    %c0_65 = arith.constant 0 : index
    %c0_66 = arith.constant 0 : index
    %c0_67 = arith.constant 0 : index
    %68 = vector.load %arg7[%c0_65, %c0_66, %c0_67] : memref<4x8x128xf32, #tpu.memory_space<vmem>>, vector<1x8x128xf32>
    %69 = vector.shape_cast %68 : vector<1x8x128xf32> to vector<8x128xf32>
    %cst_68 = arith.constant dense<0.000000e+00> : vector<8x128xf32>
    %70 = tpu.matmul %67, %65, %cst_68 {dimension_numbers = #tpu.dot_dimension_numbers<[1], [0], [0], [1], [0, 0, 1, 1], [], []>} : vector<8x128xf32>, vector<128x128xf32>, vector<8x128xf32> -> vector<8x128xf32>
    %71 = arith.addf %69, %70 : vector<8x128xf32>
    %72 = math.tanh %71 : vector<8x128xf32>
    %c1_69 = arith.constant 1 : index
    %c0_70 = arith.constant 0 : index
    %c0_71 = arith.constant 0 : index
    %73 = vector.load %arg7[%c1_69, %c0_70, %c0_71] : memref<4x8x128xf32, #tpu.memory_space<vmem>>, vector<1x8x128xf32>
    %74 = vector.shape_cast %73 : vector<1x8x128xf32> to vector<8x128xf32>
    %cst_72 = arith.constant dense<0.000000e+00> : vector<8x128xf32>
    %75 = tpu.matmul %72, %65, %cst_72 {dimension_numbers = #tpu.dot_dimension_numbers<[1], [0], [0], [1], [0, 0, 1, 1], [], []>} : vector<8x128xf32>, vector<128x128xf32>, vector<8x128xf32> -> vector<8x128xf32>
    %76 = arith.addf %74, %75 : vector<8x128xf32>
    %77 = math.tanh %76 : vector<8x128xf32>
    %c2_73 = arith.constant 2 : index
    %c0_74 = arith.constant 0 : index
    %c0_75 = arith.constant 0 : index
    %78 = vector.load %arg7[%c2_73, %c0_74, %c0_75] : memref<4x8x128xf32, #tpu.memory_space<vmem>>, vector<1x8x128xf32>
    %79 = vector.shape_cast %78 : vector<1x8x128xf32> to vector<8x128xf32>
    %cst_76 = arith.constant dense<0.000000e+00> : vector<8x128xf32>
    %80 = tpu.matmul %77, %65, %cst_76 {dimension_numbers = #tpu.dot_dimension_numbers<[1], [0], [0], [1], [0, 0, 1, 1], [], []>} : vector<8x128xf32>, vector<128x128xf32>, vector<8x128xf32> -> vector<8x128xf32>
    %81 = arith.addf %79, %80 : vector<8x128xf32>
    %82 = math.tanh %81 : vector<8x128xf32>
    %c3_77 = arith.constant 3 : index
    %c0_78 = arith.constant 0 : index
    %c0_79 = arith.constant 0 : index
    %83 = vector.load %arg7[%c3_77, %c0_78, %c0_79] : memref<4x8x128xf32, #tpu.memory_space<vmem>>, vector<1x8x128xf32>
    %84 = vector.shape_cast %83 : vector<1x8x128xf32> to vector<8x128xf32>
    %cst_80 = arith.constant dense<0.000000e+00> : vector<8x128xf32>
    %85 = tpu.matmul %82, %65, %cst_80 {dimension_numbers = #tpu.dot_dimension_numbers<[1], [0], [0], [1], [0, 0, 1, 1], [], []>} : vector<8x128xf32>, vector<128x128xf32>, vector<8x128xf32> -> vector<8x128xf32>
    %86 = arith.addf %84, %85 : vector<8x128xf32>
    %87 = math.tanh %86 : vector<8x128xf32>
    %c1_81 = arith.constant 1 : index
    %c0_82 = arith.constant 0 : index
    %c0_83 = arith.constant 0 : index
    %88 = vector.load %arg6[%c1_81, %c0_82, %c0_83] : memref<2x8x128xf32, #tpu.memory_space<vmem>>, vector<1x8x128xf32>
    %89 = vector.shape_cast %88 : vector<1x8x128xf32> to vector<8x128xf32>
    %90 = vector.shape_cast %87 : vector<8x128xf32> to vector<1x8x128xf32>
    tpu.vector_store %arg6[%c1_81, %c0_82, %c0_83], %90 {strides = array<i32>} : memref<2x8x128xf32, #tpu.memory_space<vmem>>, vector<1x8x128xf32>,
    return
  }
  func.func @transform_0(%arg0: i32, %arg1: i32) -> (i32, i32, i32) {
    %c0_i32 = arith.constant 0 : i32
    %c0_i32_0 = arith.constant 0 : i32
    return %arg1, %arg0, %c0_i32 : i32, i32, i32
  }
  func.func @transform_1(%arg0: i32, %arg1: i32) -> (i32, i32, i32) {
    %c0_i32 = arith.constant 0 : i32
    %c0_i32_0 = arith.constant 0 : i32
    %c0_i32_1 = arith.constant 0 : i32
    %c0_i32_2 = arith.constant 0 : i32
    return %c0_i32, %c0_i32_0, %c0_i32_1 : i32, i32, i32
  }
  func.func @transform_2(%arg0: i32, %arg1: i32) -> (i32, i32, i32) {
    %c0_i32 = arith.constant 0 : i32
    %c0_i32_0 = arith.constant 0 : i32
    %c0_i32_1 = arith.constant 0 : i32
    %c0_i32_2 = arith.constant 0 : i32
    return %c0_i32, %c0_i32_0, %c0_i32_1 : i32, i32, i32
  }
  func.func @transform_3(%arg0: i32, %arg1: i32) -> (i32, i32, i32) {
    %c0_i32 = arith.constant 0 : i32
    %c0_i32_0 = arith.constant 0 : i32
    %c0_i32_1 = arith.constant 0 : i32
    %c0_i32_2 = arith.constant 0 : i32
    return %c0_i32, %c0_i32_0, %c0_i32_1 : i32, i32, i32
  }
  func.func @transform_4(%arg0: i32, %arg1: i32) -> (i32, i32, i32) {
    %c0_i32 = arith.constant 0 : i32
    %c0_i32_0 = arith.constant 0 : i32
    %c0_i32_1 = arith.constant 0 : i32
    return %c0_i32, %arg0, %c0_i32_0 : i32, i32, i32
  }
}

</mosaic_0001>

<llo_original>
// kernel: encoder_rnn_forward.1
$region0: #{encoder_rnn_forward.1}
  #allocation0 [shape = 'u32[]', space=smem, size = 0x4, offset = 0x4, fixed_abs, tag = 'smem constant byte address 0x4 - core index']
  #allocation1 [shape = 'u32[144,128]{1,0:T(1,128)}', space=vmem, size = 0x12000, scoped, tag = 'internal scratch']
  #allocation2 [shape = 'f32[4,8,128]{2,1,0:T(8,128)}', space=vmem, size = 0x4000, scoped, tag = 'scratch operand']
  %s0 = inlined_call_operand.vmem [shape: f32[8,8,128], index: 0, kind: input, shape index: {}]
  %s1 = inlined_call_operand.vmem [shape: f32[2,128,128], index: 1, kind: input, shape index: {}]
  %s2 = inlined_call_operand.vmem [shape: f32[2,128,128], index: 2, kind: input, shape index: {}]
  %s3 = inlined_call_operand.vmem [shape: f32[2,1,128], index: 3, kind: input, shape index: {}]
  %s4 = inlined_call_operand.vmem [shape: f32[2,8,128], index: 4, kind: output, shape index: {}]
  %s5 = sld [smem:[#allocation0]]
  $region53: #{encoder_rnn_forward.1} parent=0
    _
  %s7 = ssub.s32 1, %s5
  %s8 = scalar_select 0, %s7, %s5
  loop: start=0, step=1, limit=4
  $region2: #{encoder_rnn_forward.1} parent=0 // loop_pre_header
    _
  $region3: #{encoder_rnn_forward.1} parent=0 // loop_header
    %s10 = sphi 0, %s14
    %p11 = scmp.ge.s32.totalorder %s10, 4
    %s17 = sphi 0, %s29
    %s18 = sphi 0, %s25
    %s19 = sphi 0, %s17
    %s20 = sphi 0, %s18
    %s21 = sphi 0, %s19
    %s22 = sphi 0, %s20
    %s34 = sphi 0, %s36
    %s37 = sphi 0, %s34
    %s38 = sphi 0, %s37
    %s54 = sphi 0, %s38
    %s58 = sphi 0, %s58
    %s60 = sphi 0, %s58
    %s61 = sphi 0, %s60
    %s75 = sphi 0, %s61
    %s79 = sphi 0, %s79
    %s81 = sphi 0, %s79
    %s82 = sphi 0, %s81
    %s96 = sphi 0, %s82
    %s100 = sphi 0, %s100
    %s102 = sphi 0, %s100
    %s103 = sphi 0, %s102
    %s117 = sphi 0, %s103
    %s123 = sphi 0, %s125
    %s126 = sphi 0, %s123
    %s127 = sphi 0, %s126
    %s143 = sphi 0, %s127
  $region4: #{encoder_rnn_forward.1} parent=0 // loop_header_branch
    %13 = sbr.rel (%p11) target = $region8
  $region5: #{encoder_rnn_forward.1} parent=0 // loop_body
    %s15 = ssub.s32 %s10, 1
    %s16 = ssub.s32 %s10, 2
    %s23 = sadd.s32 1, %s18
    %p24 = scmp.ge.s32.totalorder %s23, 2
    %s25 = scalar_select %p24, 0, %s23
    %s26 = sadd.s32 1, %s17
    %s27 = scalar_select %p24, %s26, %s17
    %p28 = scmp.ge.s32.totalorder %s27, 1
    %s29 = scalar_select %p28, 0, %s27
    %s30 = ssub.s32 %s18, %s25
    %s31 = ssub.s32 %s17, %s29
    %s32 = sor.u32 %s30, %s31
    %p33 = scmp.eq.s32.totalorder %s32, 0
    %s35 = sadd.s32 %s34, 1
    %s36 = scalar_select %p33, %s34, %s35
    %p39 = pneg %p33
    %p40 = scmp.eq.s32.totalorder %s10, 1
    %p41 = por %p39, %p40
    %p42 = scmp.ne.s32.totalorder %s34, %s37
    %p43 = scmp.eq.s32.totalorder %s10, 0
    %p44 = por %p42, %p43
    %p45 = scmp.ne.s32.totalorder %s34, %s37
    %p46 = scmp.eq.s32.totalorder %s15, 1
    %p47 = por %p45, %p46
    %p48 = scmp.ne.s32.totalorder %s37, %s38
    %p49 = scmp.eq.s32.totalorder %s15, 0
    %p50 = por %p48, %p49
    %p51 = scmp.ne.s32.totalorder %s37, %s38
    %p52 = scmp.eq.s32.totalorder %s16, 1
    %p53 = por %p51, %p52
    %p55 = scmp.ne.s32.totalorder %s38, %s54
    %p56 = scmp.eq.s32.totalorder %s16, 0
    %p57 = por %p55, %p56
    %s59 = sadd.s32 %s58, 1
    %p62 = scmp.eq.s32.totalorder %s10, 1
    %p63 = scmp.ne.s32.totalorder %s58, %s60
    %p64 = scmp.eq.s32.totalorder %s10, 0
    %p65 = por %p63, %p64
    %p66 = scmp.ne.s32.totalorder %s58, %s60
    %p67 = scmp.eq.s32.totalorder %s15, 1
    %p68 = por %p66, %p67
    %p69 = scmp.ne.s32.totalorder %s60, %s61
    %p70 = scmp.eq.s32.totalorder %s15, 0
    %p71 = por %p69, %p70
    %p72 = scmp.ne.s32.totalorder %s60, %s61
    %p73 = scmp.eq.s32.totalorder %s16, 1
    %p74 = por %p72, %p73
    %p76 = scmp.ne.s32.totalorder %s61, %s75
    %p77 = scmp.eq.s32.totalorder %s16, 0
    %p78 = por %p76, %p77
    %s80 = sadd.s32 %s79, 1
    %p83 = scmp.eq.s32.totalorder %s10, 1
    %p84 = scmp.ne.s32.totalorder %s79, %s81
    %p85 = scmp.eq.s32.totalorder %s10, 0
    %p86 = por %p84, %p85
    %p87 = scmp.ne.s32.totalorder %s79, %s81
    %p88 = scmp.eq.s32.totalorder %s15, 1
    %p89 = por %p87, %p88
    %p90 = scmp.ne.s32.totalorder %s81, %s82
    %p91 = scmp.eq.s32.totalorder %s15, 0
    %p92 = por %p90, %p91
    %p93 = scmp.ne.s32.totalorder %s81, %s82
    %p94 = scmp.eq.s32.totalorder %s16, 1
    %p95 = por %p93, %p94
    %p97 = scmp.ne.s32.totalorder %s82, %s96
    %p98 = scmp.eq.s32.totalorder %s16, 0
    %p99 = por %p97, %p98
    %s101 = sadd.s32 %s100, 1
    %p104 = scmp.eq.s32.totalorder %s10, 1
    %p105 = scmp.ne.s32.totalorder %s100, %s102
    %p106 = scmp.eq.s32.totalorder %s10, 0
    %p107 = por %p105, %p106
    %p108 = scmp.ne.s32.totalorder %s100, %s102
    %p109 = scmp.eq.s32.totalorder %s15, 1
    %p110 = por %p108, %p109
    %p111 = scmp.ne.s32.totalorder %s102, %s103
    %p112 = scmp.eq.s32.totalorder %s15, 0
    %p113 = por %p111, %p112
    %p114 = scmp.ne.s32.totalorder %s102, %s103
    %p115 = scmp.eq.s32.totalorder %s16, 1
    %p116 = por %p114, %p115
    %p118 = scmp.ne.s32.totalorder %s103, %s117
    %p119 = scmp.eq.s32.totalorder %s16, 0
    %p120 = por %p118, %p119
    %s121 = ssub.s32 %s17, %s29
    %p122 = scmp.eq.s32.totalorder %s121, 0
    %s124 = sadd.s32 %s123, 1
    %s125 = scalar_select %p122, %s123, %s124
    %p128 = pneg %p122
    %p129 = scmp.eq.s32.totalorder %s10, 1
    %p130 = por %p128, %p129
    %p131 = scmp.ne.s32.totalorder %s123, %s126
    %p132 = scmp.eq.s32.totalorder %s10, 0
    %p133 = por %p131, %p132
    %p134 = scmp.ne.s32.totalorder %s123, %s126
    %p135 = scmp.eq.s32.totalorder %s15, 1
    %p136 = por %p134, %p135
    %p137 = scmp.ne.s32.totalorder %s126, %s127
    %p138 = scmp.eq.s32.totalorder %s15, 0
    %p139 = por %p137, %p138
    %p140 = scmp.ne.s32.totalorder %s126, %s127
    %p141 = scmp.eq.s32.totalorder %s16, 1
    %p142 = por %p140, %p141
    %p144 = scmp.ne.s32.totalorder %s127, %s143
    %p145 = scmp.eq.s32.totalorder %s16, 0
    %p146 = por %p144, %p145
    %p147 = scmp.le.s32.totalorder 1, %s10
    %p148 = scmp.lt.s32.totalorder %s10, 3
    %p149 = pnand %p147, %p148
    %p150 = pneg %p149
    // Predicated region
    $region9: #{encoder_rnn_forward.1} parent=5 // pred_check
      _
    $region10: #{encoder_rnn_forward.1} parent=5 // pred_check_branch
      %152 = sbr.rel (%p149) target = $region12
    $region11: #{encoder_rnn_forward.1} parent=5 // pred_region
      %s153 = ssub.s32 %s10, 1
      // Predicated region
      $region13: #{encoder_rnn_forward.1} parent=11 // pred_check
        %p154 = pneg %p71
      $region14: #{encoder_rnn_forward.1} parent=11 // pred_check_branch
        %156 = sbr.rel (%p154) target = $region16
      $region15: #{encoder_rnn_forward.1} parent=11 // pred_region
        _
      $region16: #{encoder_rnn_forward.1} parent=11 // pred_fallthru
        _
      // Predicated region
      $region17: #{encoder_rnn_forward.1} parent=11 // pred_check
        %p157 = pneg %p92
      $region18: #{encoder_rnn_forward.1} parent=11 // pred_check_branch
        %159 = sbr.rel (%p157) target = $region20
      $region19: #{encoder_rnn_forward.1} parent=11 // pred_region
        _
      $region20: #{encoder_rnn_forward.1} parent=11 // pred_fallthru
        _
      // Predicated region
      $region21: #{encoder_rnn_forward.1} parent=11 // pred_check
        %p160 = pneg %p113
      $region22: #{encoder_rnn_forward.1} parent=11 // pred_check_branch
        %162 = sbr.rel (%p160) target = $region24
      $region23: #{encoder_rnn_forward.1} parent=11 // pred_region
        _
      $region24: #{encoder_rnn_forward.1} parent=11 // pred_fallthru
        _
    $region12: #{encoder_rnn_forward.1} parent=5 // pred_fallthru
      _
    %p163 = scmp.lt.s32.totalorder %s10, 2
    // Predicated region
    $region25: #{encoder_rnn_forward.1} parent=5 // pred_check
      %p164 = pneg %p163
    $region26: #{encoder_rnn_forward.1} parent=5 // pred_check_branch
      %166 = sbr.rel (%p164) target = $region28
    $region27: #{encoder_rnn_forward.1} parent=5 // pred_region
      // Predicated region
      $region29: #{encoder_rnn_forward.1} parent=27 // pred_check
        %p167 = pneg %p44
      $region30: #{encoder_rnn_forward.1} parent=27 // pred_check_branch
        %169 = sbr.rel (%p167) target = $region32
      $region31: #{encoder_rnn_forward.1} parent=27 // pred_region
        %s170 = smul.u32 4, %s18
        %p171 = scmp.lt.s32.totalorder %s170, 7
        %s172 = scalar_select %p171, %s170, 7
        %p173 = scmp.lt.s32.totalorder %s17, 0
        %s174 = scalar_select %p173, %s17, 0
        %s175 = sadd.s32 %s174, %s172
        %s176 = smul.addr %s175, 8
        %s177 = scalar_lea.vmem %s0, %s176
        %s178 = smul.u32 4, %s18
      $region32: #{encoder_rnn_forward.1} parent=27 // pred_fallthru
        _
    $region28: #{encoder_rnn_forward.1} parent=5 // pred_fallthru
      _
    %p179 = scmp.le.s32.totalorder 1, %s10
    %p180 = scmp.lt.s32.totalorder %s10, 3
    %p181 = pnand %p179, %p180
    %p182 = pneg %p181
    // Predicated region
    $region33: #{encoder_rnn_forward.1} parent=5 // pred_check
      _
    $region34: #{encoder_rnn_forward.1} parent=5 // pred_check_branch
      %184 = sbr.rel (%p181) target = $region36
    $region35: #{encoder_rnn_forward.1} parent=5 // pred_region
      %s185 = ssub.s32 %s10, 1
      %s186 = smul.u32 4, %s20
      %p187 = scmp.lt.s32.totalorder %s186, 7
      %s188 = scalar_select %p187, %s186, 7
      %p189 = scmp.lt.s32.totalorder %s19, 0
      %s190 = scalar_select %p189, %s19, 0
      %s191 = sadd.s32 %s190, %s188
      %s192 = smul.addr %s191, 8
      %s193 = scalar_lea.vmem %s0, %s192
      %p194 = pneg %p50
      %p195 = pneg %p47
      %p196 = pneg %p71
      %p197 = pneg %p68
      %p198 = pneg %p92
      %p199 = pneg %p89
      %p200 = pneg %p113
      %p201 = pneg %p110
      %p202 = pneg %p139
      %p203 = pneg %p136
      %p204 = scmp.lt.s32.totalorder %s19, 0
      %s205 = scalar_select %p204, %s19, 0
      %s206 = smul.addr %s205, 8
      %s207 = scalar_lea.vmem %s4, %s206
      %s208 = smul.u32 4, %s20
      %p209 = scmp.lt.s32.totalorder %s208, 7
      %s210 = scalar_select %p209, %s208, 7
      %p211 = scmp.lt.s32.totalorder %s19, 0
      %s212 = scalar_select %p211, %s19, 0
      %s213 = sadd.s32 %s212, %s210
      %s214 = smul.addr %s213, 8
      %s215 = scalar_lea.vmem %s0, %s214
      %s216 = smul.u32 4, %s20
      %p217 = scmp.lt.s32.totalorder %s19, 0
      %s218 = scalar_select %p217, %s19, 0
      %s219 = smul.addr %s218, 8
      %s220 = scalar_lea.vmem %s4, %s219
      %p221 = scmp.eq.s32.totalorder %s20, 0
      // Predicated region
      $region37: #{encoder_rnn_forward.1} parent=35 // pred_check
        %p222 = pneg %p221
      $region38: #{encoder_rnn_forward.1} parent=35 // pred_check_branch
        %224 = sbr.rel (%p222) target = $region40
      $region39: #{encoder_rnn_forward.1} parent=35 // pred_region
        %225 = vst [vmem:[%s220] sm:$0xff] 0.0
        %226 = vst [vmem:[%s220 + $0x8] sm:$0xff] 0.0
      $region40: #{encoder_rnn_forward.1} parent=35 // pred_fallthru
        _
      %v227 = vld [vmem:[%s215] sm:$0xff]
      %v228 = vld [vmem:[%s215 + $0x8] sm:$0xff]
      %v229 = vld [vmem:[%s215 + $0x10] sm:$0xff]
      %v230 = vld [vmem:[%s215 + $0x18] sm:$0xff]
      %v231 = vld [vmem:[%s1] sm:$0xff]
      %v232 = vld [vmem:[%s1 + $0x8] sm:$0xff]
      %v233 = vld [vmem:[%s1 + $0x10] sm:$0xff]
      %v234 = vld [vmem:[%s1 + $0x18] sm:$0xff]
      %v235 = vld [vmem:[%s1 + $0x20] sm:$0xff]
      %v236 = vld [vmem:[%s1 + $0x28] sm:$0xff]
      %v237 = vld [vmem:[%s1 + $0x30] sm:$0xff]
      %v238 = vld [vmem:[%s1 + $0x38] sm:$0xff]
      %v239 = vld [vmem:[%s1 + $0x40] sm:$0xff]
      %v240 = vld [vmem:[%s1 + $0x48] sm:$0xff]
      %v241 = vld [vmem:[%s1 + $0x50] sm:$0xff]
      %v242 = vld [vmem:[%s1 + $0x58] sm:$0xff]
      %v243 = vld [vmem:[%s1 + $0x60] sm:$0xff]
      %v244 = vld [vmem:[%s1 + $0x68] sm:$0xff]
      %v245 = vld [vmem:[%s1 + $0x70] sm:$0xff]
      %v246 = vld [vmem:[%s1 + $0x78] sm:$0xff]
      %v247 = vld [vmem:[%s3] sm:$0x1]
      %v249 = vlaneseq
      %v250 = vshrl.u32 %v249, 7
      %v251 = vsub.s32 0, %v250
      %v252 = vrot.slane %v247, %v251
      %254 = vmatprep.subr.mxu0 0.0
      %255 = vmatpush1.msra.mxu0 %v246
      %256 = vmatprep.subr.mxu0 0.0
      %257 = vmatpush1.msra.mxu0 %v245
      %258 = vmatprep.subr.mxu0 0.0
      %259 = vmatpush1.msra.mxu0 %v244
      %260 = vmatprep.subr.mxu0 0.0
      %261 = vmatpush1.msra.mxu0 %v243
      %262 = vmatprep.subr.mxu0 0.0
      %263 = vmatpush1.msra.mxu0 %v242
      %264 = vmatprep.subr.mxu0 0.0
      %265 = vmatpush1.msra.mxu0 %v241
      %266 = vmatprep.subr.mxu0 0.0
      %267 = vmatpush1.msra.mxu0 %v240
      %268 = vmatprep.subr.mxu0 0.0
      %269 = vmatpush1.msra.mxu0 %v239
      %270 = vmatprep.subr.mxu0 0.0
      %271 = vmatpush1.msra.mxu0 %v238
      %272 = vmatprep.subr.mxu0 0.0
      %273 = vmatpush1.msra.mxu0 %v237
      %274 = vmatprep.subr.mxu0 0.0
      %275 = vmatpush1.msra.mxu0 %v236
      %276 = vmatprep.subr.mxu0 0.0
      %277 = vmatpush1.msra.mxu0 %v235
      %278 = vmatprep.subr.mxu0 0.0
      %279 = vmatpush1.msra.mxu0 %v234
      %280 = vmatprep.subr.mxu0 0.0
      %281 = vmatpush1.msra.mxu0 %v233
      %282 = vmatprep.subr.mxu0 0.0
      %283 = vmatpush1.msra.mxu0 %v232
      %284 = vmatprep.subr.mxu0 0.0
      %285 = vmatpush1.msra.mxu0 %v231
      %286 = vmatprep.subr.mxu0 0.0
      %287 = vmatpush2.msra.mxu0 0.0
      %288 = vmatprep.subr.mxu0 0.0
      %289 = vmatpush2.msra.mxu0 0.0
      %290 = vmatprep.subr.mxu0 0.0
      %291 = vmatpush2.msra.mxu0 0.0
      %292 = vmatprep.subr.mxu0 0.0
      %293 = vmatpush2.msra.mxu0 0.0
      %294 = vmatprep.subr.mxu0 0.0
      %295 = vmatpush2.msra.mxu0 0.0
      %296 = vmatprep.subr.mxu0 0.0
      %297 = vmatpush2.msra.mxu0 0.0
      %298 = vmatprep.subr.mxu0 0.0
      %299 = vmatpush2.msra.mxu0 0.0
      %300 = vmatprep.subr.mxu0 0.0
      %301 = vmatpush2.msra.mxu0 0.0
      %302 = vmatprep.subr.mxu0 0.0
      %303 = vmatpush2.msra.mxu0 0.0
      %304 = vmatprep.subr.mxu0 0.0
      %305 = vmatpush2.msra.mxu0 0.0
      %306 = vmatprep.subr.mxu0 0.0
      %307 = vmatpush2.msra.mxu0 0.0
      %308 = vmatprep.subr.mxu0 0.0
      %309 = vmatpush2.msra.mxu0 0.0
      %310 = vmatprep.subr.mxu0 0.0
      %311 = vmatpush2.msra.mxu0 0.0
      %312 = vmatprep.subr.mxu0 0.0
      %313 = vmatpush2.msra.mxu0 0.0
      %314 = vmatprep.subr.mxu0 0.0
      %315 = vmatpush2.msra.mxu0 0.0
      %316 = vmatprep.subr.mxu0 0.0
      %317 = vmatpush2.msra.mxu0 0.0
      %318 = vmatprep.mubr.f32.mxu0 0.0
      %319 = vmatmul.mubr.f32.gmra.mxu0 %v227
      %v320 = vpop.f32.mrf.mxu0
      %v321 = vadd.f32 %v252, %v320
      %v322 = vpop.f32.mrf.mxu0
      %323 = vmatprep.mubr.f32.mxu0 0.0
      %324 = vmatmul.mubr.f32.gmra.mxu0 %v228
      %v325 = vpop.f32.mrf.mxu0
      %v326 = vadd.f32 %v252, %v325
      %v327 = vpop.f32.mrf.mxu0
      %328 = vmatprep.mubr.f32.mxu0 0.0
      %329 = vmatmul.mubr.f32.gmra.mxu0 %v229
      %v330 = vpop.f32.mrf.mxu0
      %v331 = vadd.f32 %v252, %v330
      %v332 = vpop.f32.mrf.mxu0
      %333 = vmatprep.mubr.f32.mxu0 0.0
      %334 = vmatmul.mubr.f32.gmra.mxu0 %v230
      %v335 = vpop.f32.mrf.mxu0
      %v336 = vadd.f32 %v252, %v335
      %v337 = vpop.f32.mrf.mxu0
      %338 = vdwg.mxu0
      %339 = vst [vmem:[#allocation2] sm:$0xff] %v321
      %340 = vst [vmem:[#allocation2 + $0x8] sm:$0xff] %v326
      %341 = vst [vmem:[#allocation2 + $0x10] sm:$0xff] %v331
      %342 = vst [vmem:[#allocation2 + $0x18] sm:$0xff] %v336
      %v343 = vld [vmem:[%s2] sm:$0xff]
      %v344 = vld [vmem:[%s2 + $0x8] sm:$0xff]
      %v345 = vld [vmem:[%s2 + $0x10] sm:$0xff]
      %v346 = vld [vmem:[%s2 + $0x18] sm:$0xff]
      %v347 = vld [vmem:[%s2 + $0x20] sm:$0xff]
      %v348 = vld [vmem:[%s2 + $0x28] sm:$0xff]
      %v349 = vld [vmem:[%s2 + $0x30] sm:$0xff]
      %v350 = vld [vmem:[%s2 + $0x38] sm:$0xff]
      %v351 = vld [vmem:[%s2 + $0x40] sm:$0xff]
      %v352 = vld [vmem:[%s2 + $0x48] sm:$0xff]
      %v353 = vld [vmem:[%s2 + $0x50] sm:$0xff]
      %v354 = vld [vmem:[%s2 + $0x58] sm:$0xff]
      %v355 = vld [vmem:[%s2 + $0x60] sm:$0xff]
      %v356 = vld [vmem:[%s2 + $0x68] sm:$0xff]
      %v357 = vld [vmem:[%s2 + $0x70] sm:$0xff]
      %v358 = vld [vmem:[%s2 + $0x78] sm:$0xff]
      %v359 = vld [vmem:[%s220] sm:$0xff]
      %v360 = vld [vmem:[#allocation2] sm:$0xff]
      %361 = vmatprep.subr.mxu0 0.0
      %362 = vmatpush1.msra.mxu0 %v358
      %363 = vmatprep.subr.mxu0 0.0
      %364 = vmatpush1.msra.mxu0 %v357
      %365 = vmatprep.subr.mxu0 0.0
      %366 = vmatpush1.msra.mxu0 %v356
      %367 = vmatprep.subr.mxu0 0.0
      %368 = vmatpush1.msra.mxu0 %v355
      %369 = vmatprep.subr.mxu0 0.0
      %370 = vmatpush1.msra.mxu0 %v354
      %371 = vmatprep.subr.mxu0 0.0
      %372 = vmatpush1.msra.mxu0 %v353
      %373 = vmatprep.subr.mxu0 0.0
      %374 = vmatpush1.msra.mxu0 %v352
      %375 = vmatprep.subr.mxu0 0.0
      %376 = vmatpush1.msra.mxu0 %v351
      %377 = vmatprep.subr.mxu0 0.0
      %378 = vmatpush1.msra.mxu0 %v350
      %379 = vmatprep.subr.mxu0 0.0
      %380 = vmatpush1.msra.mxu0 %v349
      %381 = vmatprep.subr.mxu0 0.0
      %382 = vmatpush1.msra.mxu0 %v348
      %383 = vmatprep.subr.mxu0 0.0
      %384 = vmatpush1.msra.mxu0 %v347
      %385 = vmatprep.subr.mxu0 0.0
      %386 = vmatpush1.msra.mxu0 %v346
      %387 = vmatprep.subr.mxu0 0.0
      %388 = vmatpush1.msra.mxu0 %v345
      %389 = vmatprep.subr.mxu0 0.0
      %390 = vmatpush1.msra.mxu0 %v344
      %391 = vmatprep.subr.mxu0 0.0
      %392 = vmatpush1.msra.mxu0 %v343
      %393 = vmatprep.subr.mxu0 0.0
      %394 = vmatpush2.msra.mxu0 0.0
      %395 = vmatprep.subr.mxu0 0.0
      %396 = vmatpush2.msra.mxu0 0.0
      %397 = vmatprep.subr.mxu0 0.0
      %398 = vmatpush2.msra.mxu0 0.0
      %399 = vmatprep.subr.mxu0 0.0
      %400 = vmatpush2.msra.mxu0 0.0
      %401 = vmatprep.subr.mxu0 0.0
      %402 = vmatpush2.msra.mxu0 0.0
      %403 = vmatprep.subr.mxu0 0.0
      %404 = vmatpush2.msra.mxu0 0.0
      %405 = vmatprep.subr.mxu0 0.0
      %406 = vmatpush2.msra.mxu0 0.0
      %407 = vmatprep.subr.mxu0 0.0
      %408 = vmatpush2.msra.mxu0 0.0
      %409 = vmatprep.subr.mxu0 0.0
      %410 = vmatpush2.msra.mxu0 0.0
      %411 = vmatprep.subr.mxu0 0.0
      %412 = vmatpush2.msra.mxu0 0.0
      %413 = vmatprep.subr.mxu0 0.0
      %414 = vmatpush2.msra.mxu0 0.0
      %415 = vmatprep.subr.mxu0 0.0
      %416 = vmatpush2.msra.mxu0 0.0
      %417 = vmatprep.subr.mxu0 0.0
      %418 = vmatpush2.msra.mxu0 0.0
      %419 = vmatprep.subr.mxu0 0.0
      %420 = vmatpush2.msra.mxu0 0.0
      %421 = vmatprep.subr.mxu0 0.0
      %422 = vmatpush2.msra.mxu0 0.0
      %423 = vmatprep.subr.mxu0 0.0
      %424 = vmatpush2.msra.mxu0 0.0
      %425 = vmatprep.mubr.f32.mxu0 0.0
      %426 = vmatmul.mubr.f32.gmra.mxu0 %v359
      %v427 = vpop.f32.mrf.mxu0
      %v428 = vadd.f32 0.0, %v427
      %v429 = vpop.f32.mrf.mxu0
      %430 = vdwg.mxu0
      %v431 = vadd.f32 %v360, %v428
      %v432 = vtanh.pop %v431
      %433 = vst [vmem:[#allocation2] sm:$0xff] %v432
      %s434 = scalar_lea.vmem [#allocation2], 8
      %v435 = vld [vmem:[%s434] sm:$0xff]
      %436 = vmatprep.subr.mxu0 0.0
      %437 = vmatpush1.msra.mxu0 %v358
      %438 = vmatprep.subr.mxu0 0.0
      %439 = vmatpush1.msra.mxu0 %v357
      %440 = vmatprep.subr.mxu0 0.0
      %441 = vmatpush1.msra.mxu0 %v356
      %442 = vmatprep.subr.mxu0 0.0
      %443 = vmatpush1.msra.mxu0 %v355
      %444 = vmatprep.subr.mxu0 0.0
      %445 = vmatpush1.msra.mxu0 %v354
      %446 = vmatprep.subr.mxu0 0.0
      %447 = vmatpush1.msra.mxu0 %v353
      %448 = vmatprep.subr.mxu0 0.0
      %449 = vmatpush1.msra.mxu0 %v352
      %450 = vmatprep.subr.mxu0 0.0
      %451 = vmatpush1.msra.mxu0 %v351
      %452 = vmatprep.subr.mxu0 0.0
      %453 = vmatpush1.msra.mxu0 %v350
      %454 = vmatprep.subr.mxu0 0.0
      %455 = vmatpush1.msra.mxu0 %v349
      %456 = vmatprep.subr.mxu0 0.0
      %457 = vmatpush1.msra.mxu0 %v348
      %458 = vmatprep.subr.mxu0 0.0
      %459 = vmatpush1.msra.mxu0 %v347
      %460 = vmatprep.subr.mxu0 0.0
      %461 = vmatpush1.msra.mxu0 %v346
      %462 = vmatprep.subr.mxu0 0.0
      %463 = vmatpush1.msra.mxu0 %v345
      %464 = vmatprep.subr.mxu0 0.0
      %465 = vmatpush1.msra.mxu0 %v344
      %466 = vmatprep.subr.mxu0 0.0
      %467 = vmatpush1.msra.mxu0 %v343
      %468 = vmatprep.subr.mxu0 0.0
      %469 = vmatpush2.msra.mxu0 0.0
      %470 = vmatprep.subr.mxu0 0.0
      %471 = vmatpush2.msra.mxu0 0.0
      %472 = vmatprep.subr.mxu0 0.0
      %473 = vmatpush2.msra.mxu0 0.0
      %474 = vmatprep.subr.mxu0 0.0
      %475 = vmatpush2.msra.mxu0 0.0
      %476 = vmatprep.subr.mxu0 0.0
      %477 = vmatpush2.msra.mxu0 0.0
      %478 = vmatprep.subr.mxu0 0.0
      %479 = vmatpush2.msra.mxu0 0.0
      %480 = vmatprep.subr.mxu0 0.0
      %481 = vmatpush2.msra.mxu0 0.0
      %482 = vmatprep.subr.mxu0 0.0
      %483 = vmatpush2.msra.mxu0 0.0
      %484 = vmatprep.subr.mxu0 0.0
      %485 = vmatpush2.msra.mxu0 0.0
      %486 = vmatprep.subr.mxu0 0.0
      %487 = vmatpush2.msra.mxu0 0.0
      %488 = vmatprep.subr.mxu0 0.0
      %489 = vmatpush2.msra.mxu0 0.0
      %490 = vmatprep.subr.mxu0 0.0
      %491 = vmatpush2.msra.mxu0 0.0
      %492 = vmatprep.subr.mxu0 0.0
      %493 = vmatpush2.msra.mxu0 0.0
      %494 = vmatprep.subr.mxu0 0.0
      %495 = vmatpush2.msra.mxu0 0.0
      %496 = vmatprep.subr.mxu0 0.0
      %497 = vmatpush2.msra.mxu0 0.0
      %498 = vmatprep.subr.mxu0 0.0
      %499 = vmatpush2.msra.mxu0 0.0
      %500 = vmatprep.mubr.f32.mxu0 0.0
      %501 = vmatmul.mubr.f32.gmra.mxu0 %v432
      %v502 = vpop.f32.mrf.mxu0
      %v503 = vadd.f32 0.0, %v502
      %v504 = vpop.f32.mrf.mxu0
      %505 = vdwg.mxu0
      %v506 = vadd.f32 %v435, %v503
      %v507 = vtanh.pop %v506
      %508 = vst [vmem:[%s434] sm:$0xff] %v507
      %s509 = scalar_lea.vmem [#allocation2], 16
      %v510 = vld [vmem:[%s509] sm:$0xff]
      %511 = vmatprep.subr.mxu0 0.0
      %512 = vmatpush1.msra.mxu0 %v358
      %513 = vmatprep.subr.mxu0 0.0
      %514 = vmatpush1.msra.mxu0 %v357
      %515 = vmatprep.subr.mxu0 0.0
      %516 = vmatpush1.msra.mxu0 %v356
      %517 = vmatprep.subr.mxu0 0.0
      %518 = vmatpush1.msra.mxu0 %v355
      %519 = vmatprep.subr.mxu0 0.0
      %520 = vmatpush1.msra.mxu0 %v354
      %521 = vmatprep.subr.mxu0 0.0
      %522 = vmatpush1.msra.mxu0 %v353
      %523 = vmatprep.subr.mxu0 0.0
      %524 = vmatpush1.msra.mxu0 %v352
      %525 = vmatprep.subr.mxu0 0.0
      %526 = vmatpush1.msra.mxu0 %v351
      %527 = vmatprep.subr.mxu0 0.0
      %528 = vmatpush1.msra.mxu0 %v350
      %529 = vmatprep.subr.mxu0 0.0
      %530 = vmatpush1.msra.mxu0 %v349
      %531 = vmatprep.subr.mxu0 0.0
      %532 = vmatpush1.msra.mxu0 %v348
      %533 = vmatprep.subr.mxu0 0.0
      %534 = vmatpush1.msra.mxu0 %v347
      %535 = vmatprep.subr.mxu0 0.0
      %536 = vmatpush1.msra.mxu0 %v346
      %537 = vmatprep.subr.mxu0 0.0
      %538 = vmatpush1.msra.mxu0 %v345
      %539 = vmatprep.subr.mxu0 0.0
      %540 = vmatpush1.msra.mxu0 %v344
      %541 = vmatprep.subr.mxu0 0.0
      %542 = vmatpush1.msra.mxu0 %v343
      %543 = vmatprep.subr.mxu0 0.0
      %544 = vmatpush2.msra.mxu0 0.0
      %545 = vmatprep.subr.mxu0 0.0
      %546 = vmatpush2.msra.mxu0 0.0
      %547 = vmatprep.subr.mxu0 0.0
      %548 = vmatpush2.msra.mxu0 0.0
      %549 = vmatprep.subr.mxu0 0.0
      %550 = vmatpush2.msra.mxu0 0.0
      %551 = vmatprep.subr.mxu0 0.0
      %552 = vmatpush2.msra.mxu0 0.0
      %553 = vmatprep.subr.mxu0 0.0
      %554 = vmatpush2.msra.mxu0 0.0
      %555 = vmatprep.subr.mxu0 0.0
      %556 = vmatpush2.msra.mxu0 0.0
      %557 = vmatprep.subr.mxu0 0.0
      %558 = vmatpush2.msra.mxu0 0.0
      %559 = vmatprep.subr.mxu0 0.0
      %560 = vmatpush2.msra.mxu0 0.0
      %561 = vmatprep.subr.mxu0 0.0
      %562 = vmatpush2.msra.mxu0 0.0
      %563 = vmatprep.subr.mxu0 0.0
      %564 = vmatpush2.msra.mxu0 0.0
      %565 = vmatprep.subr.mxu0 0.0
      %566 = vmatpush2.msra.mxu0 0.0
      %567 = vmatprep.subr.mxu0 0.0
      %568 = vmatpush2.msra.mxu0 0.0
      %569 = vmatprep.subr.mxu0 0.0
      %570 = vmatpush2.msra.mxu0 0.0
      %571 = vmatprep.subr.mxu0 0.0
      %572 = vmatpush2.msra.mxu0 0.0
      %573 = vmatprep.subr.mxu0 0.0
      %574 = vmatpush2.msra.mxu0 0.0
      %575 = vmatprep.mubr.f32.mxu0 0.0
      %576 = vmatmul.mubr.f32.gmra.mxu0 %v507
      %v577 = vpop.f32.mrf.mxu0
      %v578 = vadd.f32 0.0, %v577
      %v579 = vpop.f32.mrf.mxu0
      %580 = vdwg.mxu0
      %v581 = vadd.f32 %v510, %v578
      %v582 = vtanh.pop %v581
      %583 = vst [vmem:[%s509] sm:$0xff] %v582
      %s584 = scalar_lea.vmem [#allocation2], 24
      %v585 = vld [vmem:[%s584] sm:$0xff]
      %586 = vmatprep.subr.mxu0 0.0
      %587 = vmatpush1.msra.mxu0 %v358
      %588 = vmatprep.subr.mxu0 0.0
      %589 = vmatpush1.msra.mxu0 %v357
      %590 = vmatprep.subr.mxu0 0.0
      %591 = vmatpush1.msra.mxu0 %v356
      %592 = vmatprep.subr.mxu0 0.0
      %593 = vmatpush1.msra.mxu0 %v355
      %594 = vmatprep.subr.mxu0 0.0
      %595 = vmatpush1.msra.mxu0 %v354
      %596 = vmatprep.subr.mxu0 0.0
      %597 = vmatpush1.msra.mxu0 %v353
      %598 = vmatprep.subr.mxu0 0.0
      %599 = vmatpush1.msra.mxu0 %v352
      %600 = vmatprep.subr.mxu0 0.0
      %601 = vmatpush1.msra.mxu0 %v351
      %602 = vmatprep.subr.mxu0 0.0
      %603 = vmatpush1.msra.mxu0 %v350
      %604 = vmatprep.subr.mxu0 0.0
      %605 = vmatpush1.msra.mxu0 %v349
      %606 = vmatprep.subr.mxu0 0.0
      %607 = vmatpush1.msra.mxu0 %v348
      %608 = vmatprep.subr.mxu0 0.0
      %609 = vmatpush1.msra.mxu0 %v347
      %610 = vmatprep.subr.mxu0 0.0
      %611 = vmatpush1.msra.mxu0 %v346
      %612 = vmatprep.subr.mxu0 0.0
      %613 = vmatpush1.msra.mxu0 %v345
      %614 = vmatprep.subr.mxu0 0.0
      %615 = vmatpush1.msra.mxu0 %v344
      %616 = vmatprep.subr.mxu0 0.0
      %617 = vmatpush1.msra.mxu0 %v343
      %618 = vmatprep.subr.mxu0 0.0
      %619 = vmatpush2.msra.mxu0 0.0
      %620 = vmatprep.subr.mxu0 0.0
      %621 = vmatpush2.msra.mxu0 0.0
      %622 = vmatprep.subr.mxu0 0.0
      %623 = vmatpush2.msra.mxu0 0.0
      %624 = vmatprep.subr.mxu0 0.0
      %625 = vmatpush2.msra.mxu0 0.0
      %626 = vmatprep.subr.mxu0 0.0
      %627 = vmatpush2.msra.mxu0 0.0
      %628 = vmatprep.subr.mxu0 0.0
      %629 = vmatpush2.msra.mxu0 0.0
      %630 = vmatprep.subr.mxu0 0.0
      %631 = vmatpush2.msra.mxu0 0.0
      %632 = vmatprep.subr.mxu0 0.0
      %633 = vmatpush2.msra.mxu0 0.0
      %634 = vmatprep.subr.mxu0 0.0
      %635 = vmatpush2.msra.mxu0 0.0
      %636 = vmatprep.subr.mxu0 0.0
      %637 = vmatpush2.msra.mxu0 0.0
      %638 = vmatprep.subr.mxu0 0.0
      %639 = vmatpush2.msra.mxu0 0.0
      %640 = vmatprep.subr.mxu0 0.0
      %641 = vmatpush2.msra.mxu0 0.0
      %642 = vmatprep.subr.mxu0 0.0
      %643 = vmatpush2.msra.mxu0 0.0
      %644 = vmatprep.subr.mxu0 0.0
      %645 = vmatpush2.msra.mxu0 0.0
      %646 = vmatprep.subr.mxu0 0.0
      %647 = vmatpush2.msra.mxu0 0.0
      %648 = vmatprep.subr.mxu0 0.0
      %649 = vmatpush2.msra.mxu0 0.0
      %650 = vmatprep.mubr.f32.mxu0 0.0
      %651 = vmatmul.mubr.f32.gmra.mxu0 %v582
      %v652 = vpop.f32.mrf.mxu0
      %v653 = vadd.f32 0.0, %v652
      %v654 = vpop.f32.mrf.mxu0
      %655 = vdwg.mxu0
      %v656 = vadd.f32 %v585, %v653
      %v657 = vtanh.pop %v656
      %658 = vst [vmem:[%s584] sm:$0xff] %v657
      %659 = vst [vmem:[%s220] sm:$0xff] %v657
      %v660 = vld [vmem:[#allocation2] sm:$0xff]
      %v661 = vld [vmem:[#allocation2 + $0x8] sm:$0xff]
      %v662 = vld [vmem:[#allocation2 + $0x10] sm:$0xff]
      %v663 = vld [vmem:[#allocation2 + $0x18] sm:$0xff]
      %s664 = scalar_lea.vmem %s1, 128
      %v665 = vld [vmem:[%s664] sm:$0xff]
      %v666 = vld [vmem:[%s664 + $0x8] sm:$0xff]
      %v667 = vld [vmem:[%s664 + $0x10] sm:$0xff]
      %v668 = vld [vmem:[%s664 + $0x18] sm:$0xff]
      %v669 = vld [vmem:[%s664 + $0x20] sm:$0xff]
      %v670 = vld [vmem:[%s664 + $0x28] sm:$0xff]
      %v671 = vld [vmem:[%s664 + $0x30] sm:$0xff]
      %v672 = vld [vmem:[%s664 + $0x38] sm:$0xff]
      %v673 = vld [vmem:[%s664 + $0x40] sm:$0xff]
      %v674 = vld [vmem:[%s664 + $0x48] sm:$0xff]
      %v675 = vld [vmem:[%s664 + $0x50] sm:$0xff]
      %v676 = vld [vmem:[%s664 + $0x58] sm:$0xff]
      %v677 = vld [vmem:[%s664 + $0x60] sm:$0xff]
      %v678 = vld [vmem:[%s664 + $0x68] sm:$0xff]
      %v679 = vld [vmem:[%s664 + $0x70] sm:$0xff]
      %v680 = vld [vmem:[%s664 + $0x78] sm:$0xff]
      %s681 = scalar_lea.vmem %s3, 1
      %v682 = vld [vmem:[%s681] sm:$0x1]
      %v684 = vlaneseq
      %v685 = vshrl.u32 %v684, 7
      %v686 = vsub.s32 0, %v685
      %v687 = vrot.slane %v682, %v686
      %689 = vmatprep.subr.mxu0 0.0
      %690 = vmatpush1.msra.mxu0 %v680
      %691 = vmatprep.subr.mxu0 0.0
      %692 = vmatpush1.msra.mxu0 %v679
      %693 = vmatprep.subr.mxu0 0.0
      %694 = vmatpush1.msra.mxu0 %v678
      %695 = vmatprep.subr.mxu0 0.0
      %696 = vmatpush1.msra.mxu0 %v677
      %697 = vmatprep.subr.mxu0 0.0
      %698 = vmatpush1.msra.mxu0 %v676
      %699 = vmatprep.subr.mxu0 0.0
      %700 = vmatpush1.msra.mxu0 %v675
      %701 = vmatprep.subr.mxu0 0.0
      %702 = vmatpush1.msra.mxu0 %v674
      %703 = vmatprep.subr.mxu0 0.0
      %704 = vmatpush1.msra.mxu0 %v673
      %705 = vmatprep.subr.mxu0 0.0
      %706 = vmatpush1.msra.mxu0 %v672
      %707 = vmatprep.subr.mxu0 0.0
      %708 = vmatpush1.msra.mxu0 %v671
      %709 = vmatprep.subr.mxu0 0.0
      %710 = vmatpush1.msra.mxu0 %v670
      %711 = vmatprep.subr.mxu0 0.0
      %712 = vmatpush1.msra.mxu0 %v669
      %713 = vmatprep.subr.mxu0 0.0
      %714 = vmatpush1.msra.mxu0 %v668
      %715 = vmatprep.subr.mxu0 0.0
      %716 = vmatpush1.msra.mxu0 %v667
      %717 = vmatprep.subr.mxu0 0.0
      %718 = vmatpush1.msra.mxu0 %v666
      %719 = vmatprep.subr.mxu0 0.0
      %720 = vmatpush1.msra.mxu0 %v665
      %721 = vmatprep.subr.mxu0 0.0
      %722 = vmatpush2.msra.mxu0 0.0
      %723 = vmatprep.subr.mxu0 0.0
      %724 = vmatpush2.msra.mxu0 0.0
      %725 = vmatprep.subr.mxu0 0.0
      %726 = vmatpush2.msra.mxu0 0.0
      %727 = vmatprep.subr.mxu0 0.0
      %728 = vmatpush2.msra.mxu0 0.0
      %729 = vmatprep.subr.mxu0 0.0
      %730 = vmatpush2.msra.mxu0 0.0
      %731 = vmatprep.subr.mxu0 0.0
      %732 = vmatpush2.msra.mxu0 0.0
      %733 = vmatprep.subr.mxu0 0.0
      %734 = vmatpush2.msra.mxu0 0.0
      %735 = vmatprep.subr.mxu0 0.0
      %736 = vmatpush2.msra.mxu0 0.0
      %737 = vmatprep.subr.mxu0 0.0
      %738 = vmatpush2.msra.mxu0 0.0
      %739 = vmatprep.subr.mxu0 0.0
      %740 = vmatpush2.msra.mxu0 0.0
      %741 = vmatprep.subr.mxu0 0.0
      %742 = vmatpush2.msra.mxu0 0.0
      %743 = vmatprep.subr.mxu0 0.0
      %744 = vmatpush2.msra.mxu0 0.0
      %745 = vmatprep.subr.mxu0 0.0
      %746 = vmatpush2.msra.mxu0 0.0
      %747 = vmatprep.subr.mxu0 0.0
      %748 = vmatpush2.msra.mxu0 0.0
      %749 = vmatprep.subr.mxu0 0.0
      %750 = vmatpush2.msra.mxu0 0.0
      %751 = vmatprep.subr.mxu0 0.0
      %752 = vmatpush2.msra.mxu0 0.0
      %753 = vmatprep.mubr.f32.mxu0 0.0
      %754 = vmatmul.mubr.f32.gmra.mxu0 %v660
      %v755 = vpop.f32.mrf.mxu0
      %v756 = vadd.f32 %v687, %v755
      %v757 = vpop.f32.mrf.mxu0
      %758 = vmatprep.mubr.f32.mxu0 0.0
      %759 = vmatmul.mubr.f32.gmra.mxu0 %v661
      %v760 = vpop.f32.mrf.mxu0
      %v761 = vadd.f32 %v687, %v760
      %v762 = vpop.f32.mrf.mxu0
      %763 = vmatprep.mubr.f32.mxu0 0.0
      %764 = vmatmul.mubr.f32.gmra.mxu0 %v662
      %v765 = vpop.f32.mrf.mxu0
      %v766 = vadd.f32 %v687, %v765
      %v767 = vpop.f32.mrf.mxu0
      %768 = vmatprep.mubr.f32.mxu0 0.0
      %769 = vmatmul.mubr.f32.gmra.mxu0 %v663
      %v770 = vpop.f32.mrf.mxu0
      %v771 = vadd.f32 %v687, %v770
      %v772 = vpop.f32.mrf.mxu0
      %773 = vdwg.mxu0
      %774 = vst [vmem:[#allocation2] sm:$0xff] %v756
      %775 = vst [vmem:[#allocation2 + $0x8] sm:$0xff] %v761
      %776 = vst [vmem:[#allocation2 + $0x10] sm:$0xff] %v766
      %777 = vst [vmem:[#allocation2 + $0x18] sm:$0xff] %v771
      %s778 = scalar_lea.vmem %s2, 128
      %v779 = vld [vmem:[%s778] sm:$0xff]
      %v780 = vld [vmem:[%s778 + $0x8] sm:$0xff]
      %v781 = vld [vmem:[%s778 + $0x10] sm:$0xff]
      %v782 = vld [vmem:[%s778 + $0x18] sm:$0xff]
      %v783 = vld [vmem:[%s778 + $0x20] sm:$0xff]
      %v784 = vld [vmem:[%s778 + $0x28] sm:$0xff]
      %v785 = vld [vmem:[%s778 + $0x30] sm:$0xff]
      %v786 = vld [vmem:[%s778 + $0x38] sm:$0xff]
      %v787 = vld [vmem:[%s778 + $0x40] sm:$0xff]
      %v788 = vld [vmem:[%s778 + $0x48] sm:$0xff]
      %v789 = vld [vmem:[%s778 + $0x50] sm:$0xff]
      %v790 = vld [vmem:[%s778 + $0x58] sm:$0xff]
      %v791 = vld [vmem:[%s778 + $0x60] sm:$0xff]
      %v792 = vld [vmem:[%s778 + $0x68] sm:$0xff]
      %v793 = vld [vmem:[%s778 + $0x70] sm:$0xff]
      %v794 = vld [vmem:[%s778 + $0x78] sm:$0xff]
      %s795 = scalar_lea.vmem %s220, 8
      %v796 = vld [vmem:[%s795] sm:$0xff]
      %v797 = vld [vmem:[#allocation2] sm:$0xff]
      %798 = vmatprep.subr.mxu0 0.0
      %799 = vmatpush1.msra.mxu0 %v794
      %800 = vmatprep.subr.mxu0 0.0
      %801 = vmatpush1.msra.mxu0 %v793
      %802 = vmatprep.subr.mxu0 0.0
      %803 = vmatpush1.msra.mxu0 %v792
      %804 = vmatprep.subr.mxu0 0.0
      %805 = vmatpush1.msra.mxu0 %v791
      %806 = vmatprep.subr.mxu0 0.0
      %807 = vmatpush1.msra.mxu0 %v790
      %808 = vmatprep.subr.mxu0 0.0
      %809 = vmatpush1.msra.mxu0 %v789
      %810 = vmatprep.subr.mxu0 0.0
      %811 = vmatpush1.msra.mxu0 %v788
      %812 = vmatprep.subr.mxu0 0.0
      %813 = vmatpush1.msra.mxu0 %v787
      %814 = vmatprep.subr.mxu0 0.0
      %815 = vmatpush1.msra.mxu0 %v786
      %816 = vmatprep.subr.mxu0 0.0
      %817 = vmatpush1.msra.mxu0 %v785
      %818 = vmatprep.subr.mxu0 0.0
      %819 = vmatpush1.msra.mxu0 %v784
      %820 = vmatprep.subr.mxu0 0.0
      %821 = vmatpush1.msra.mxu0 %v783
      %822 = vmatprep.subr.mxu0 0.0
      %823 = vmatpush1.msra.mxu0 %v782
      %824 = vmatprep.subr.mxu0 0.0
      %825 = vmatpush1.msra.mxu0 %v781
      %826 = vmatprep.subr.mxu0 0.0
      %827 = vmatpush1.msra.mxu0 %v780
      %828 = vmatprep.subr.mxu0 0.0
      %829 = vmatpush1.msra.mxu0 %v779
      %830 = vmatprep.subr.mxu0 0.0
      %831 = vmatpush2.msra.mxu0 0.0
      %832 = vmatprep.subr.mxu0 0.0
      %833 = vmatpush2.msra.mxu0 0.0
      %834 = vmatprep.subr.mxu0 0.0
      %835 = vmatpush2.msra.mxu0 0.0
      %836 = vmatprep.subr.mxu0 0.0
      %837 = vmatpush2.msra.mxu0 0.0
      %838 = vmatprep.subr.mxu0 0.0
      %839 = vmatpush2.msra.mxu0 0.0
      %840 = vmatprep.subr.mxu0 0.0
      %841 = vmatpush2.msra.mxu0 0.0
      %842 = vmatprep.subr.mxu0 0.0
      %843 = vmatpush2.msra.mxu0 0.0
      %844 = vmatprep.subr.mxu0 0.0
      %845 = vmatpush2.msra.mxu0 0.0
      %846 = vmatprep.subr.mxu0 0.0
      %847 = vmatpush2.msra.mxu0 0.0
      %848 = vmatprep.subr.mxu0 0.0
      %849 = vmatpush2.msra.mxu0 0.0
      %850 = vmatprep.subr.mxu0 0.0
      %851 = vmatpush2.msra.mxu0 0.0
      %852 = vmatprep.subr.mxu0 0.0
      %853 = vmatpush2.msra.mxu0 0.0
      %854 = vmatprep.subr.mxu0 0.0
      %855 = vmatpush2.msra.mxu0 0.0
      %856 = vmatprep.subr.mxu0 0.0
      %857 = vmatpush2.msra.mxu0 0.0
      %858 = vmatprep.subr.mxu0 0.0
      %859 = vmatpush2.msra.mxu0 0.0
      %860 = vmatprep.subr.mxu0 0.0
      %861 = vmatpush2.msra.mxu0 0.0
      %862 = vmatprep.mubr.f32.mxu0 0.0
      %863 = vmatmul.mubr.f32.gmra.mxu0 %v796
      %v864 = vpop.f32.mrf.mxu0
      %v865 = vadd.f32 0.0, %v864
      %v866 = vpop.f32.mrf.mxu0
      %867 = vdwg.mxu0
      %v868 = vadd.f32 %v797, %v865
      %v869 = vtanh.pop %v868
      %v870 = vld [vmem:[%s434] sm:$0xff]
      %871 = vmatprep.subr.mxu0 0.0
      %872 = vmatpush1.msra.mxu0 %v794
      %873 = vmatprep.subr.mxu0 0.0
      %874 = vmatpush1.msra.mxu0 %v793
      %875 = vmatprep.subr.mxu0 0.0
      %876 = vmatpush1.msra.mxu0 %v792
      %877 = vmatprep.subr.mxu0 0.0
      %878 = vmatpush1.msra.mxu0 %v791
      %879 = vmatprep.subr.mxu0 0.0
      %880 = vmatpush1.msra.mxu0 %v790
      %881 = vmatprep.subr.mxu0 0.0
      %882 = vmatpush1.msra.mxu0 %v789
      %883 = vmatprep.subr.mxu0 0.0
      %884 = vmatpush1.msra.mxu0 %v788
      %885 = vmatprep.subr.mxu0 0.0
      %886 = vmatpush1.msra.mxu0 %v787
      %887 = vmatprep.subr.mxu0 0.0
      %888 = vmatpush1.msra.mxu0 %v786
      %889 = vmatprep.subr.mxu0 0.0
      %890 = vmatpush1.msra.mxu0 %v785
      %891 = vmatprep.subr.mxu0 0.0
      %892 = vmatpush1.msra.mxu0 %v784
      %893 = vmatprep.subr.mxu0 0.0
      %894 = vmatpush1.msra.mxu0 %v783
      %895 = vmatprep.subr.mxu0 0.0
      %896 = vmatpush1.msra.mxu0 %v782
      %897 = vmatprep.subr.mxu0 0.0
      %898 = vmatpush1.msra.mxu0 %v781
      %899 = vmatprep.subr.mxu0 0.0
      %900 = vmatpush1.msra.mxu0 %v780
      %901 = vmatprep.subr.mxu0 0.0
      %902 = vmatpush1.msra.mxu0 %v779
      %903 = vmatprep.subr.mxu0 0.0
      %904 = vmatpush2.msra.mxu0 0.0
      %905 = vmatprep.subr.mxu0 0.0
      %906 = vmatpush2.msra.mxu0 0.0
      %907 = vmatprep.subr.mxu0 0.0
      %908 = vmatpush2.msra.mxu0 0.0
      %909 = vmatprep.subr.mxu0 0.0
      %910 = vmatpush2.msra.mxu0 0.0
      %911 = vmatprep.subr.mxu0 0.0
      %912 = vmatpush2.msra.mxu0 0.0
      %913 = vmatprep.subr.mxu0 0.0
      %914 = vmatpush2.msra.mxu0 0.0
      %915 = vmatprep.subr.mxu0 0.0
      %916 = vmatpush2.msra.mxu0 0.0
      %917 = vmatprep.subr.mxu0 0.0
      %918 = vmatpush2.msra.mxu0 0.0
      %919 = vmatprep.subr.mxu0 0.0
      %920 = vmatpush2.msra.mxu0 0.0
      %921 = vmatprep.subr.mxu0 0.0
      %922 = vmatpush2.msra.mxu0 0.0
      %923 = vmatprep.subr.mxu0 0.0
      %924 = vmatpush2.msra.mxu0 0.0
      %925 = vmatprep.subr.mxu0 0.0
      %926 = vmatpush2.msra.mxu0 0.0
      %927 = vmatprep.subr.mxu0 0.0
      %928 = vmatpush2.msra.mxu0 0.0
      %929 = vmatprep.subr.mxu0 0.0
      %930 = vmatpush2.msra.mxu0 0.0
      %931 = vmatprep.subr.mxu0 0.0
      %932 = vmatpush2.msra.mxu0 0.0
      %933 = vmatprep.subr.mxu0 0.0
      %934 = vmatpush2.msra.mxu0 0.0
      %935 = vmatprep.mubr.f32.mxu0 0.0
      %936 = vmatmul.mubr.f32.gmra.mxu0 %v869
      %v937 = vpop.f32.mrf.mxu0
      %v938 = vadd.f32 0.0, %v937
      %v939 = vpop.f32.mrf.mxu0
      %940 = vdwg.mxu0
      %v941 = vadd.f32 %v870, %v938
      %v942 = vtanh.pop %v941
      %v943 = vld [vmem:[%s509] sm:$0xff]
      %944 = vmatprep.subr.mxu0 0.0
      %945 = vmatpush1.msra.mxu0 %v794
      %946 = vmatprep.subr.mxu0 0.0
      %947 = vmatpush1.msra.mxu0 %v793
      %948 = vmatprep.subr.mxu0 0.0
      %949 = vmatpush1.msra.mxu0 %v792
      %950 = vmatprep.subr.mxu0 0.0
      %951 = vmatpush1.msra.mxu0 %v791
      %952 = vmatprep.subr.mxu0 0.0
      %953 = vmatpush1.msra.mxu0 %v790
      %954 = vmatprep.subr.mxu0 0.0
      %955 = vmatpush1.msra.mxu0 %v789
      %956 = vmatprep.subr.mxu0 0.0
      %957 = vmatpush1.msra.mxu0 %v788
      %958 = vmatprep.subr.mxu0 0.0
      %959 = vmatpush1.msra.mxu0 %v787
      %960 = vmatprep.subr.mxu0 0.0
      %961 = vmatpush1.msra.mxu0 %v786
      %962 = vmatprep.subr.mxu0 0.0
      %963 = vmatpush1.msra.mxu0 %v785
      %964 = vmatprep.subr.mxu0 0.0
      %965 = vmatpush1.msra.mxu0 %v784
      %966 = vmatprep.subr.mxu0 0.0
      %967 = vmatpush1.msra.mxu0 %v783
      %968 = vmatprep.subr.mxu0 0.0
      %969 = vmatpush1.msra.mxu0 %v782
      %970 = vmatprep.subr.mxu0 0.0
      %971 = vmatpush1.msra.mxu0 %v781
      %972 = vmatprep.subr.mxu0 0.0
      %973 = vmatpush1.msra.mxu0 %v780
      %974 = vmatprep.subr.mxu0 0.0
      %975 = vmatpush1.msra.mxu0 %v779
      %976 = vmatprep.subr.mxu0 0.0
      %977 = vmatpush2.msra.mxu0 0.0
      %978 = vmatprep.subr.mxu0 0.0
      %979 = vmatpush2.msra.mxu0 0.0
      %980 = vmatprep.subr.mxu0 0.0
      %981 = vmatpush2.msra.mxu0 0.0
      %982 = vmatprep.subr.mxu0 0.0
      %983 = vmatpush2.msra.mxu0 0.0
      %984 = vmatprep.subr.mxu0 0.0
      %985 = vmatpush2.msra.mxu0 0.0
      %986 = vmatprep.subr.mxu0 0.0
      %987 = vmatpush2.msra.mxu0 0.0
      %988 = vmatprep.subr.mxu0 0.0
      %989 = vmatpush2.msra.mxu0 0.0
      %990 = vmatprep.subr.mxu0 0.0
      %991 = vmatpush2.msra.mxu0 0.0
      %992 = vmatprep.subr.mxu0 0.0
      %993 = vmatpush2.msra.mxu0 0.0
      %994 = vmatprep.subr.mxu0 0.0
      %995 = vmatpush2.msra.mxu0 0.0
      %996 = vmatprep.subr.mxu0 0.0
      %997 = vmatpush2.msra.mxu0 0.0
      %998 = vmatprep.subr.mxu0 0.0
      %999 = vmatpush2.msra.mxu0 0.0
      %1000 = vmatprep.subr.mxu0 0.0
      %1001 = vmatpush2.msra.mxu0 0.0
      %1002 = vmatprep.subr.mxu0 0.0
      %1003 = vmatpush2.msra.mxu0 0.0
      %1004 = vmatprep.subr.mxu0 0.0
      %1005 = vmatpush2.msra.mxu0 0.0
      %1006 = vmatprep.subr.mxu0 0.0
      %1007 = vmatpush2.msra.mxu0 0.0
      %1008 = vmatprep.mubr.f32.mxu0 0.0
      %1009 = vmatmul.mubr.f32.gmra.mxu0 %v942
      %v1010 = vpop.f32.mrf.mxu0
      %v1011 = vadd.f32 0.0, %v1010
      %v1012 = vpop.f32.mrf.mxu0
      %1013 = vdwg.mxu0
      %v1014 = vadd.f32 %v943, %v1011
      %v1015 = vtanh.pop %v1014
      %v1016 = vld [vmem:[%s584] sm:$0xff]
      %1017 = vmatprep.subr.mxu0 0.0
      %1018 = vmatpush1.msra.mxu0 %v794
      %1019 = vmatprep.subr.mxu0 0.0
      %1020 = vmatpush1.msra.mxu0 %v793
      %1021 = vmatprep.subr.mxu0 0.0
      %1022 = vmatpush1.msra.mxu0 %v792
      %1023 = vmatprep.subr.mxu0 0.0
      %1024 = vmatpush1.msra.mxu0 %v791
      %1025 = vmatprep.subr.mxu0 0.0
      %1026 = vmatpush1.msra.mxu0 %v790
      %1027 = vmatprep.subr.mxu0 0.0
      %1028 = vmatpush1.msra.mxu0 %v789
      %1029 = vmatprep.subr.mxu0 0.0
      %1030 = vmatpush1.msra.mxu0 %v788
      %1031 = vmatprep.subr.mxu0 0.0
      %1032 = vmatpush1.msra.mxu0 %v787
      %1033 = vmatprep.subr.mxu0 0.0
      %1034 = vmatpush1.msra.mxu0 %v786
      %1035 = vmatprep.subr.mxu0 0.0
      %1036 = vmatpush1.msra.mxu0 %v785
      %1037 = vmatprep.subr.mxu0 0.0
      %1038 = vmatpush1.msra.mxu0 %v784
      %1039 = vmatprep.subr.mxu0 0.0
      %1040 = vmatpush1.msra.mxu0 %v783
      %1041 = vmatprep.subr.mxu0 0.0
      %1042 = vmatpush1.msra.mxu0 %v782
      %1043 = vmatprep.subr.mxu0 0.0
      %1044 = vmatpush1.msra.mxu0 %v781
      %1045 = vmatprep.subr.mxu0 0.0
      %1046 = vmatpush1.msra.mxu0 %v780
      %1047 = vmatprep.subr.mxu0 0.0
      %1048 = vmatpush1.msra.mxu0 %v779
      %1049 = vmatprep.subr.mxu0 0.0
      %1050 = vmatpush2.msra.mxu0 0.0
      %1051 = vmatprep.subr.mxu0 0.0
      %1052 = vmatpush2.msra.mxu0 0.0
      %1053 = vmatprep.subr.mxu0 0.0
      %1054 = vmatpush2.msra.mxu0 0.0
      %1055 = vmatprep.subr.mxu0 0.0
      %1056 = vmatpush2.msra.mxu0 0.0
      %1057 = vmatprep.subr.mxu0 0.0
      %1058 = vmatpush2.msra.mxu0 0.0
      %1059 = vmatprep.subr.mxu0 0.0
      %1060 = vmatpush2.msra.mxu0 0.0
      %1061 = vmatprep.subr.mxu0 0.0
      %1062 = vmatpush2.msra.mxu0 0.0
      %1063 = vmatprep.subr.mxu0 0.0
      %1064 = vmatpush2.msra.mxu0 0.0
      %1065 = vmatprep.subr.mxu0 0.0
      %1066 = vmatpush2.msra.mxu0 0.0
      %1067 = vmatprep.subr.mxu0 0.0
      %1068 = vmatpush2.msra.mxu0 0.0
      %1069 = vmatprep.subr.mxu0 0.0
      %1070 = vmatpush2.msra.mxu0 0.0
      %1071 = vmatprep.subr.mxu0 0.0
      %1072 = vmatpush2.msra.mxu0 0.0
      %1073 = vmatprep.subr.mxu0 0.0
      %1074 = vmatpush2.msra.mxu0 0.0
      %1075 = vmatprep.subr.mxu0 0.0
      %1076 = vmatpush2.msra.mxu0 0.0
      %1077 = vmatprep.subr.mxu0 0.0
      %1078 = vmatpush2.msra.mxu0 0.0
      %1079 = vmatprep.subr.mxu0 0.0
      %1080 = vmatpush2.msra.mxu0 0.0
      %1081 = vmatprep.mubr.f32.mxu0 0.0
      %1082 = vmatmul.mubr.f32.gmra.mxu0 %v1015
      %v1083 = vpop.f32.mrf.mxu0
      %v1084 = vadd.f32 0.0, %v1083
      %v1085 = vpop.f32.mrf.mxu0
      %1086 = vdwg.mxu0
      %v1087 = vadd.f32 %v1016, %v1084
      %v1088 = vtanh.pop %v1087
      %1089 = vst [vmem:[%s795] sm:$0xff] %v1088
      %p1090 = scmp.lt.s32.totalorder %s19, 0
      %s1091 = scalar_select %p1090, %s19, 0
      %s1092 = smul.addr %s1091, 8
      %s1093 = scalar_lea.vmem %s4, %s1092
      // Predicated region
      $region41: #{encoder_rnn_forward.1} parent=35 // pred_check
        %p1094 = pneg %p136
      $region42: #{encoder_rnn_forward.1} parent=35 // pred_check_branch
        %1096 = sbr.rel (%p1094) target = $region44
      $region43: #{encoder_rnn_forward.1} parent=35 // pred_region
        _
      $region44: #{encoder_rnn_forward.1} parent=35 // pred_fallthru
        _
      // Predicated region
      $region45: #{encoder_rnn_forward.1} parent=35 // pred_check
        %p1097 = pneg %p136
      $region46: #{encoder_rnn_forward.1} parent=35 // pred_check_branch
        %1099 = sbr.rel (%p1097) target = $region48
      $region47: #{encoder_rnn_forward.1} parent=35 // pred_region
        %p1100 = scmp.lt.s32.totalorder %s19, 0
        %s1101 = scalar_select %p1100, %s19, 0
        %s1102 = smul.addr %s1101, 8
        %s1103 = scalar_lea.vmem %s4, %s1102
      $region48: #{encoder_rnn_forward.1} parent=35 // pred_fallthru
        _
    $region36: #{encoder_rnn_forward.1} parent=5 // pred_fallthru
      _
    %p1104 = scmp.le.s32.totalorder 2, %s10
    // Predicated region
    $region49: #{encoder_rnn_forward.1} parent=5 // pred_check
      %p1105 = pneg %p1104
    $region50: #{encoder_rnn_forward.1} parent=5 // pred_check_branch
      %1107 = sbr.rel (%p1105) target = $region52
    $region51: #{encoder_rnn_forward.1} parent=5 // pred_region
      %s1108 = ssub.s32 %s10, 2
    $region52: #{encoder_rnn_forward.1} parent=5 // pred_fallthru
      _
  $region6: #{encoder_rnn_forward.1} parent=0 // loop_footer
    %s14 = sadd.s32 1, %s10
  $region7: #{encoder_rnn_forward.1} parent=0 // loop_footer_branch
    %9 = sbr.rel target = $region3
  $region8: #{encoder_rnn_forward.1} parent=0 // loop_exit
    _

</llo_original>
